<compile_context>
chip_gen: v7x
topology: tpu7x:2x2x1
jax: 0.10.0
libtpu: 0.0.40
codegen_flags: <defaults>
</compile_context>

<pallas_src>
import jax
import jax.numpy as jnp
from jax import lax
from jax.experimental import pallas as pl
from jax.experimental.pallas import tpu as pltpu

HIDDEN = 64
FC1 = 128
NUM_CLASSES = 5
OUT_PAD = 128  # lane-dense padded head output; sliced to NUM_CLASSES outside the kernel


def lstm_net_kernel(x_ref, wih_ref, b_ref, whh_ref, wh_ref, bh_ref, out_ref):
    # x_ref:   (seq*batch, 1) f32   time-major flattened LSTM input (row t*batch + b == x[t, b])
    # wih_ref: (1, 4H) f32          weight_ih_l0.T with i/f/o columns pre-scaled by 0.5
    # b_ref:   (1, 4H) f32          (b_ih + b_hh) with i/f/o columns pre-scaled by 0.5
    # whh_ref: (2H, 4H) bf16        rows [0:H] zero, rows [H:2H] = scaled weight_hh_l0.T
    # wh_ref:  (2H, OUT_PAD) f32    rows [0:H] zero, rows [H:2H] = fused head weights (padded)
    # bh_ref:  (1, OUT_PAD) f32     fused head bias (padded)
    # out_ref: (batch, OUT_PAD) f32
    batch = out_ref.shape[0]
    seq = x_ref.shape[0] // batch
    H2 = whh_ref.shape[0]          # 2H = 128  (one vreg of lanes)
    H = H2 // 2

    # Loop-invariant loads / constants hoisted (JAX does not CSE broadcast_in_dim).
    wih = wih_ref[...]                                        # (1, 4H)
    bias = b_ref[...]                                         # (1, 4H)
    lane = lax.broadcasted_iota(jnp.int32, (batch, H2), 1)
    g_lane = lane < H                                         # [g | o] vreg: low->tanh, high->sigmoid

    def gates_and_c(t, L, cH):
        # L:  (batch, 2H) f32  [junk | h_{t-1}]   (junk hits the zero weight rows)
        # cH: (batch, 2H) f32  [junk | c_{t-1}]
        start = pl.multiple_of(t * batch, batch)
        x_t = x_ref[pl.ds(start, batch), :]                   # (batch, 1)
        xg = x_t * wih + bias                                 # (batch, 4H); independent of h -> overlapped

        # Single-pass bf16 MXU matmul, f32 accumulate.  w_hh re-read from VMEM each step
        # (cheap vld) instead of holding 16 vregs live across the full unroll.
        pre = xg + jnp.dot(L.astype(jnp.bfloat16), whh_ref[...],
                           preferred_element_type=jnp.float32)  # (batch, 4H)

        # One tanh per 128-lane vreg (3 EUP passes/step incl. tanh(c) in the caller).
        t0 = jnp.tanh(pre[:, :H2])                            # over [i | f]   (both pre-scaled by 0.5)
        t1 = jnp.tanh(pre[:, H2:])                            # over [g | o]   (o pre-scaled by 0.5)
        a0 = 0.5 * t0 + 0.5                                   # [sig(i) | sig(f)]   (pure VPU)
        a1 = jnp.where(g_lane, t1, 0.5 * t1 + 0.5)            # [tanh(g) | sig(o)]

        # Lane-aligned cell update: exactly one cross-lane roll per step.
        #   a0 * a1            = [i*g  | f*o ]
        #   roll(.., H)        = [f*o  | i*g ]
        #   a0 * cH            = [junk | f*c ]
        cH_new = pltpu.roll(a0 * a1, shift=H, axis=1) + a0 * cH   # [junk | c_new]
        return a1, cH_new

    def step(t, carry):
        L, cH = carry
        a1, cH_new = gates_and_c(t, L, cH)
        # h_new lands in the HIGH half; the low half is junk that hits zero weight rows.
        L_new = a1 * jnp.tanh(cH_new)                         # [junk | h_new]
        return L_new, cH_new

    zeros = jnp.zeros((batch, H2), jnp.float32)
    # Short serial recurrence: fully unrolled for LLO overlap; last step peeled so its
    # dead h_new/tanh work is never emitted (only c_n feeds the head).
    L, cH = lax.fori_loop(0, seq - 1, step, (zeros, zeros), unroll=True)
    _, cH = gates_and_c(seq - 1, L, cH)

    # Fused fc2(fc1(.)) head on c_n (PyTorch quirk: hidden[1] is the cell state).
    # One-shot f32 matmul off the serial chain; rows [0:H] of wh are zero -> junk ignored.
    out_ref[...] = (jnp.dot(cH, wh_ref[...], preferred_element_type=jnp.float32)
                    + bh_ref[...]).astype(out_ref.dtype)


def net_forward(x, params):
    """x: (seq, batch) — same as the PyTorch Net.forward input (before unsqueeze(2))."""
    seq, batch = x.shape
    H = HIDDEN
    w_ih, w_hh, b_ih, b_hh = params["w_ih"], params["w_hh"], params["b_ih"], params["b_hh"]
    w1, b1, w2, b2 = params["w1"], params["b1"], params["w2"], params["b2"]

    # sigmoid-via-tanh rescale: scale the i/f/o gate columns by 0.5 (PyTorch order [i,f,g,o]).
    col_scale = jnp.concatenate([
        jnp.full((2 * H,), 0.5, jnp.float32),   # i, f
        jnp.ones((H,), jnp.float32),            # g
        jnp.full((H,), 0.5, jnp.float32),       # o
    ])[None, :]                                  # (1, 4H)

    x_flat = x.astype(jnp.float32).reshape(seq * batch, 1)    # unsqueeze(2) + flatten time/batch
    wih_s = (w_ih.T * col_scale).astype(jnp.float32)          # (1, 4H)
    bias_s = ((b_ih + b_hh)[None, :] * col_scale).astype(jnp.float32)   # (1, 4H)

    # h lives in the HIGH 64 lanes of the 128-lane state vreg -> recurrent weights go into
    # K rows [H:2H]; rows [0:H] are zero so the junk half of the state is ignored.  bf16 for
    # a single-pass MXU matmul (f32 accumulate in-kernel).
    whh_s = w_hh.T * col_scale                                # (H, 4H)
    whh2 = jnp.zeros((2 * H, 4 * H), jnp.float32).at[H:, :].set(whh_s).astype(jnp.bfloat16)

    # Fused fc2(fc1(.)) -> single affine (no nonlinearity in between), padded the same way
    # (K rows [H:2H]) and to 128 output lanes for an unmasked final store.  Kept f32.
    w_head = w1.T @ w2.T                                      # (H, 5)
    b_head = b1 @ w2.T + b2                                   # (5,)
    w_head2 = jnp.zeros((2 * H, OUT_PAD), jnp.float32).at[H:, :NUM_CLASSES].set(w_head)
    b_head_p = jnp.zeros((1, OUT_PAD), jnp.float32).at[:, :NUM_CLASSES].set(b_head)

    vmem = pl.BlockSpec(memory_space=pltpu.MemorySpace.VMEM)
    out_pad = pl.pallas_call(
        lstm_net_kernel,
        out_shape=jax.ShapeDtypeStruct((batch, OUT_PAD), jnp.float32),
        in_specs=[vmem] * 6,
        out_specs=vmem,
    )(x_flat, wih_s, bias_s, whh2, w_head2, b_head_p)
    return out_pad[:, :NUM_CLASSES]


def net_forward_ref(x, params):
    """Pure-JAX reference with identical semantics (for verification)."""
    w_ih, w_hh, b_ih, b_hh = params["w_ih"], params["w_hh"], params["b_ih"], params["b_hh"]
    w1, b1, w2, b2 = params["w1"], params["b1"], params["w2"], params["b2"]
    H = HIDDEN
    batch = x.shape[1]
    xs = x.astype(jnp.float32)[:, :, None]                    # (seq, batch, 1)

    def step(carry, x_t):
        h, c = carry
        gates = x_t @ w_ih.T + b_ih + h @ w_hh.T + b_hh       # (batch, 4H)
        i = jax.nn.sigmoid(gates[:, :H])
        f = jax.nn.sigmoid(gates[:, H:2 * H])
        g = jnp.tanh(gates[:, 2 * H:3 * H])
        o = jax.nn.sigmoid(gates[:, 3 * H:])
        c = f * c + i * g
        h = o * jnp.tanh(c)
        return (h, c), None

    init = (jnp.zeros((batch, H), jnp.float32), jnp.zeros((batch, H), jnp.float32))
    (_, c_n), _ = lax.scan(step, init, xs)
    return (c_n @ w1.T + b1) @ w2.T + b2


def init_params(key):
    H = HIDDEN
    s = 1.0 / jnp.sqrt(jnp.float32(H))
    ks = jax.random.split(key, 8)
    u = lambda k, shape: jax.random.uniform(k, shape, jnp.float32, -s, s)
    return dict(
        w_ih=u(ks[0], (4 * H, 1)),        # lstm.weight_ih_l0
        w_hh=u(ks[1], (4 * H, H)),        # lstm.weight_hh_l0
        b_ih=u(ks[2], (4 * H,)),          # lstm.bias_ih_l0
        b_hh=u(ks[3], (4 * H,)),          # lstm.bias_hh_l0
        w1=u(ks[4], (FC1, H)), b1=u(ks[5], (FC1,)),                   # fc1
        w2=u(ks[6], (NUM_CLASSES, FC1)), b2=u(ks[7], (NUM_CLASSES,)), # fc2
    )


if __name__ == "__main__":
    key = jax.random.PRNGKey(0)
    pkey, xkey = jax.random.split(key)
    params = init_params(pkey)

    seq, batch = 16, 8
    x = jax.random.normal(xkey, (seq, batch), jnp.float32)     # PyTorch: (seq_len, batch)

    out = jax.block_until_ready(net_forward(x, params))
    ref = jax.block_until_ready(net_forward_ref(x, params))

    assert out.shape == (batch, NUM_CLASSES)
    if not jnp.allclose(out, ref, atol=2e-3, rtol=2e-3):
        raise AssertionError("Pallas kernel output does not match JAX reference")
    print("KERNEL_OK")
</pallas_src>

<mosaic_0001>
module attributes {stable_mosaic.version = 11 : i64} {
  func.func @lstm_net_kernel(%arg0: memref<128x1xf32, #tpu.memory_space<vmem>>, %arg1: memref<1x256xf32, #tpu.memory_space<vmem>>, %arg2: memref<1x256xf32, #tpu.memory_space<vmem>>, %arg3: memref<128x256xbf16, #tpu.memory_space<vmem>>, %arg4: memref<128x128xf32, #tpu.memory_space<vmem>>, %arg5: memref<1x128xf32, #tpu.memory_space<vmem>>, %arg6: memref<8x128xf32, #tpu.memory_space<vmem>>) attributes {dimension_semantics = [], scalar_prefetch = 0 : i64, scratch_operands = 0 : i64, tpu.core_type = #tpu.core_type<tc>} {
    %c0 = arith.constant 0 : index
    %c0_0 = arith.constant 0 : index
    %0 = vector.load %arg1[%c0, %c0_0] : memref<1x256xf32, #tpu.memory_space<vmem>>, vector<1x256xf32>
    %c0_1 = arith.constant 0 : index
    %c0_2 = arith.constant 0 : index
    %1 = vector.load %arg2[%c0_1, %c0_2] : memref<1x256xf32, #tpu.memory_space<vmem>>, vector<1x256xf32>
    %2 = tpu.iota {dimensions = array<i32: 1>} : vector<8x128xi32>
    %c64_i32 = arith.constant 64 : i32
    %3 = vector.broadcast %c64_i32 : i32 to vector<8x128xi32>
    %4 = arith.cmpi slt, %2, %3 : vector<8x128xi32>
    %cst = arith.constant 0.000000e+00 : f32
    %5 = vector.broadcast %cst : f32 to vector<8x128xf32>
    %c0_i32 = arith.constant 0 : i32
    %c8_i32 = arith.constant 8 : i32
    %6 = arith.muli %c0_i32, %c8_i32 : i32
    %7 = tpu.assume_multiple %6, 8 : i32
    %8 = arith.index_cast %7 : i32 to index
    %c0_3 = arith.constant 0 : index
    %9 = vector.load %arg0[%8, %c0_3] : memref<128x1xf32, #tpu.memory_space<vmem>>, vector<8x1xf32>
    %10 = vector.broadcast %9 : vector<8x1xf32> to vector<8x256xf32>
    %11 = vector.broadcast %0 : vector<1x256xf32> to vector<8x256xf32>
    %12 = arith.mulf %10, %11 : vector<8x256xf32>
    %13 = vector.broadcast %1 : vector<1x256xf32> to vector<8x256xf32>
    %14 = arith.addf %12, %13 : vector<8x256xf32>
    %15 = arith.truncf %5 : vector<8x128xf32> to vector<8x128xbf16>
    %c0_4 = arith.constant 0 : index
    %c0_5 = arith.constant 0 : index
    %16 = vector.load %arg3[%c0_4, %c0_5] : memref<128x256xbf16, #tpu.memory_space<vmem>>, vector<128x256xbf16>
    %cst_6 = arith.constant dense<0.000000e+00> : vector<8x256xf32>
    %17 = tpu.matmul %15, %16, %cst_6 {dimension_numbers = #tpu.dot_dimension_numbers<[1], [0], [0], [1], [0, 0, 1, 1], [], []>} : vector<8x128xbf16>, vector<128x256xbf16>, vector<8x256xf32> -> vector<8x256xf32>
    %18 = arith.addf %14, %17 : vector<8x256xf32>
    %19 = vector.extract_strided_slice %18 {offsets = [0, 0], sizes = [8, 128], strides = [1, 1]} : vector<8x256xf32> to vector<8x128xf32>
    %20 = math.tanh %19 : vector<8x128xf32>
    %21 = vector.extract_strided_slice %18 {offsets = [0, 128], sizes = [8, 128], strides = [1, 1]} : vector<8x256xf32> to vector<8x128xf32>
    %22 = math.tanh %21 : vector<8x128xf32>
    %cst_7 = arith.constant 5.000000e-01 : f32
    %23 = vector.broadcast %cst_7 : f32 to vector<8x128xf32>
    %24 = arith.mulf %23, %20 : vector<8x128xf32>
    %cst_8 = arith.constant 5.000000e-01 : f32
    %25 = vector.broadcast %cst_8 : f32 to vector<8x128xf32>
    %26 = arith.addf %24, %25 : vector<8x128xf32>
    %cst_9 = arith.constant 5.000000e-01 : f32
    %27 = vector.broadcast %cst_9 : f32 to vector<8x128xf32>
    %28 = arith.mulf %27, %22 : vector<8x128xf32>
    %cst_10 = arith.constant 5.000000e-01 : f32
    %29 = vector.broadcast %cst_10 : f32 to vector<8x128xf32>
    %30 = arith.addf %28, %29 : vector<8x128xf32>
    %31 = arith.select %4, %22, %30 : vector<8x128xi1>, vector<8x128xf32>
    %32 = arith.mulf %26, %31 : vector<8x128xf32>
    %c64_i32_11 = arith.constant 64 : i32
    %33 = tpu.dynamic_rotate %32 by %c64_i32_11 dim 1 : vector<8x128xf32>, i32 -> vector<8x128xf32>
    %34 = arith.mulf %26, %5 : vector<8x128xf32>
    %35 = arith.addf %33, %34 : vector<8x128xf32>
    %36 = math.tanh %35 : vector<8x128xf32>
    %37 = arith.mulf %31, %36 : vector<8x128xf32>
    %c1_i32 = arith.constant 1 : i32
    %c8_i32_12 = arith.constant 8 : i32
    %38 = arith.muli %c1_i32, %c8_i32_12 : i32
    %39 = tpu.assume_multiple %38, 8 : i32
    %40 = arith.index_cast %39 : i32 to index
    %c0_13 = arith.constant 0 : index
    %41 = vector.load %arg0[%40, %c0_13] : memref<128x1xf32, #tpu.memory_space<vmem>>, vector<8x1xf32>
    %42 = vector.broadcast %41 : vector<8x1xf32> to vector<8x256xf32>
    %43 = vector.broadcast %0 : vector<1x256xf32> to vector<8x256xf32>
    %44 = arith.mulf %42, %43 : vector<8x256xf32>
    %45 = vector.broadcast %1 : vector<1x256xf32> to vector<8x256xf32>
    %46 = arith.addf %44, %45 : vector<8x256xf32>
    %47 = arith.truncf %37 : vector<8x128xf32> to vector<8x128xbf16>
    %c0_14 = arith.constant 0 : index
    %c0_15 = arith.constant 0 : index
    %48 = vector.load %arg3[%c0_14, %c0_15] : memref<128x256xbf16, #tpu.memory_space<vmem>>, vector<128x256xbf16>
    %cst_16 = arith.constant dense<0.000000e+00> : vector<8x256xf32>
    %49 = tpu.matmul %47, %48, %cst_16 {dimension_numbers = #tpu.dot_dimension_numbers<[1], [0], [0], [1], [0, 0, 1, 1], [], []>} : vector<8x128xbf16>, vector<128x256xbf16>, vector<8x256xf32> -> vector<8x256xf32>
    %50 = arith.addf %46, %49 : vector<8x256xf32>
    %51 = vector.extract_strided_slice %50 {offsets = [0, 0], sizes = [8, 128], strides = [1, 1]} : vector<8x256xf32> to vector<8x128xf32>
    %52 = math.tanh %51 : vector<8x128xf32>
    %53 = vector.extract_strided_slice %50 {offsets = [0, 128], sizes = [8, 128], strides = [1, 1]} : vector<8x256xf32> to vector<8x128xf32>
    %54 = math.tanh %53 : vector<8x128xf32>
    %cst_17 = arith.constant 5.000000e-01 : f32
    %55 = vector.broadcast %cst_17 : f32 to vector<8x128xf32>
    %56 = arith.mulf %55, %52 : vector<8x128xf32>
    %cst_18 = arith.constant 5.000000e-01 : f32
    %57 = vector.broadcast %cst_18 : f32 to vector<8x128xf32>
    %58 = arith.addf %56, %57 : vector<8x128xf32>
    %cst_19 = arith.constant 5.000000e-01 : f32
    %59 = vector.broadcast %cst_19 : f32 to vector<8x128xf32>
    %60 = arith.mulf %59, %54 : vector<8x128xf32>
    %cst_20 = arith.constant 5.000000e-01 : f32
    %61 = vector.broadcast %cst_20 : f32 to vector<8x128xf32>
    %62 = arith.addf %60, %61 : vector<8x128xf32>
    %63 = arith.select %4, %54, %62 : vector<8x128xi1>, vector<8x128xf32>
    %64 = arith.mulf %58, %63 : vector<8x128xf32>
    %c64_i32_21 = arith.constant 64 : i32
    %65 = tpu.dynamic_rotate %64 by %c64_i32_21 dim 1 : vector<8x128xf32>, i32 -> vector<8x128xf32>
    %66 = arith.mulf %58, %35 : vector<8x128xf32>
    %67 = arith.addf %65, %66 : vector<8x128xf32>
    %68 = math.tanh %67 : vector<8x128xf32>
    %69 = arith.mulf %63, %68 : vector<8x128xf32>
    %c2_i32 = arith.constant 2 : i32
    %c8_i32_22 = arith.constant 8 : i32
    %70 = arith.muli %c2_i32, %c8_i32_22 : i32
    %71 = tpu.assume_multiple %70, 8 : i32
    %72 = arith.index_cast %71 : i32 to index
    %c0_23 = arith.constant 0 : index
    %73 = vector.load %arg0[%72, %c0_23] : memref<128x1xf32, #tpu.memory_space<vmem>>, vector<8x1xf32>
    %74 = vector.broadcast %73 : vector<8x1xf32> to vector<8x256xf32>
    %75 = vector.broadcast %0 : vector<1x256xf32> to vector<8x256xf32>
    %76 = arith.mulf %74, %75 : vector<8x256xf32>
    %77 = vector.broadcast %1 : vector<1x256xf32> to vector<8x256xf32>
    %78 = arith.addf %76, %77 : vector<8x256xf32>
    %79 = arith.truncf %69 : vector<8x128xf32> to vector<8x128xbf16>
    %c0_24 = arith.constant 0 : index
    %c0_25 = arith.constant 0 : index
    %80 = vector.load %arg3[%c0_24, %c0_25] : memref<128x256xbf16, #tpu.memory_space<vmem>>, vector<128x256xbf16>
    %cst_26 = arith.constant dense<0.000000e+00> : vector<8x256xf32>
    %81 = tpu.matmul %79, %80, %cst_26 {dimension_numbers = #tpu.dot_dimension_numbers<[1], [0], [0], [1], [0, 0, 1, 1], [], []>} : vector<8x128xbf16>, vector<128x256xbf16>, vector<8x256xf32> -> vector<8x256xf32>
    %82 = arith.addf %78, %81 : vector<8x256xf32>
    %83 = vector.extract_strided_slice %82 {offsets = [0, 0], sizes = [8, 128], strides = [1, 1]} : vector<8x256xf32> to vector<8x128xf32>
    %84 = math.tanh %83 : vector<8x128xf32>
    %85 = vector.extract_strided_slice %82 {offsets = [0, 128], sizes = [8, 128], strides = [1, 1]} : vector<8x256xf32> to vector<8x128xf32>
    %86 = math.tanh %85 : vector<8x128xf32>
    %cst_27 = arith.constant 5.000000e-01 : f32
    %87 = vector.broadcast %cst_27 : f32 to vector<8x128xf32>
    %88 = arith.mulf %87, %84 : vector<8x128xf32>
    %cst_28 = arith.constant 5.000000e-01 : f32
    %89 = vector.broadcast %cst_28 : f32 to vector<8x128xf32>
    %90 = arith.addf %88, %89 : vector<8x128xf32>
    %cst_29 = arith.constant 5.000000e-01 : f32
    %91 = vector.broadcast %cst_29 : f32 to vector<8x128xf32>
    %92 = arith.mulf %91, %86 : vector<8x128xf32>
    %cst_30 = arith.constant 5.000000e-01 : f32
    %93 = vector.broadcast %cst_30 : f32 to vector<8x128xf32>
    %94 = arith.addf %92, %93 : vector<8x128xf32>
    %95 = arith.select %4, %86, %94 : vector<8x128xi1>, vector<8x128xf32>
    %96 = arith.mulf %90, %95 : vector<8x128xf32>
    %c64_i32_31 = arith.constant 64 : i32
    %97 = tpu.dynamic_rotate %96 by %c64_i32_31 dim 1 : vector<8x128xf32>, i32 -> vector<8x128xf32>
    %98 = arith.mulf %90, %67 : vector<8x128xf32>
    %99 = arith.addf %97, %98 : vector<8x128xf32>
    %100 = math.tanh %99 : vector<8x128xf32>
    %101 = arith.mulf %95, %100 : vector<8x128xf32>
    %c3_i32 = arith.constant 3 : i32
    %c8_i32_32 = arith.constant 8 : i32
    %102 = arith.muli %c3_i32, %c8_i32_32 : i32
    %103 = tpu.assume_multiple %102, 8 : i32
    %104 = arith.index_cast %103 : i32 to index
    %c0_33 = arith.constant 0 : index
    %105 = vector.load %arg0[%104, %c0_33] : memref<128x1xf32, #tpu.memory_space<vmem>>, vector<8x1xf32>
    %106 = vector.broadcast %105 : vector<8x1xf32> to vector<8x256xf32>
    %107 = vector.broadcast %0 : vector<1x256xf32> to vector<8x256xf32>
    %108 = arith.mulf %106, %107 : vector<8x256xf32>
    %109 = vector.broadcast %1 : vector<1x256xf32> to vector<8x256xf32>
    %110 = arith.addf %108, %109 : vector<8x256xf32>
    %111 = arith.truncf %101 : vector<8x128xf32> to vector<8x128xbf16>
    %c0_34 = arith.constant 0 : index
    %c0_35 = arith.constant 0 : index
    %112 = vector.load %arg3[%c0_34, %c0_35] : memref<128x256xbf16, #tpu.memory_space<vmem>>, vector<128x256xbf16>
    %cst_36 = arith.constant dense<0.000000e+00> : vector<8x256xf32>
    %113 = tpu.matmul %111, %112, %cst_36 {dimension_numbers = #tpu.dot_dimension_numbers<[1], [0], [0], [1], [0, 0, 1, 1], [], []>} : vector<8x128xbf16>, vector<128x256xbf16>, vector<8x256xf32> -> vector<8x256xf32>
    %114 = arith.addf %110, %113 : vector<8x256xf32>
    %115 = vector.extract_strided_slice %114 {offsets = [0, 0], sizes = [8, 128], strides = [1, 1]} : vector<8x256xf32> to vector<8x128xf32>
    %116 = math.tanh %115 : vector<8x128xf32>
    %117 = vector.extract_strided_slice %114 {offsets = [0, 128], sizes = [8, 128], strides = [1, 1]} : vector<8x256xf32> to vector<8x128xf32>
    %118 = math.tanh %117 : vector<8x128xf32>
    %cst_37 = arith.constant 5.000000e-01 : f32
    %119 = vector.broadcast %cst_37 : f32 to vector<8x128xf32>
    %120 = arith.mulf %119, %116 : vector<8x128xf32>
    %cst_38 = arith.constant 5.000000e-01 : f32
    %121 = vector.broadcast %cst_38 : f32 to vector<8x128xf32>
    %122 = arith.addf %120, %121 : vector<8x128xf32>
    %cst_39 = arith.constant 5.000000e-01 : f32
    %123 = vector.broadcast %cst_39 : f32 to vector<8x128xf32>
    %124 = arith.mulf %123, %118 : vector<8x128xf32>
    %cst_40 = arith.constant 5.000000e-01 : f32
    %125 = vector.broadcast %cst_40 : f32 to vector<8x128xf32>
    %126 = arith.addf %124, %125 : vector<8x128xf32>
    %127 = arith.select %4, %118, %126 : vector<8x128xi1>, vector<8x128xf32>
    %128 = arith.mulf %122, %127 : vector<8x128xf32>
    %c64_i32_41 = arith.constant 64 : i32
    %129 = tpu.dynamic_rotate %128 by %c64_i32_41 dim 1 : vector<8x128xf32>, i32 -> vector<8x128xf32>
    %130 = arith.mulf %122, %99 : vector<8x128xf32>
    %131 = arith.addf %129, %130 : vector<8x128xf32>
    %132 = math.tanh %131 : vector<8x128xf32>
    %133 = arith.mulf %127, %132 : vector<8x128xf32>
    %c4_i32 = arith.constant 4 : i32
    %c8_i32_42 = arith.constant 8 : i32
    %134 = arith.muli %c4_i32, %c8_i32_42 : i32
    %135 = tpu.assume_multiple %134, 8 : i32
    %136 = arith.index_cast %135 : i32 to index
    %c0_43 = arith.constant 0 : index
    %137 = vector.load %arg0[%136, %c0_43] : memref<128x1xf32, #tpu.memory_space<vmem>>, vector<8x1xf32>
    %138 = vector.broadcast %137 : vector<8x1xf32> to vector<8x256xf32>
    %139 = vector.broadcast %0 : vector<1x256xf32> to vector<8x256xf32>
    %140 = arith.mulf %138, %139 : vector<8x256xf32>
    %141 = vector.broadcast %1 : vector<1x256xf32> to vector<8x256xf32>
    %142 = arith.addf %140, %141 : vector<8x256xf32>
    %143 = arith.truncf %133 : vector<8x128xf32> to vector<8x128xbf16>
    %c0_44 = arith.constant 0 : index
    %c0_45 = arith.constant 0 : index
    %144 = vector.load %arg3[%c0_44, %c0_45] : memref<128x256xbf16, #tpu.memory_space<vmem>>, vector<128x256xbf16>
    %cst_46 = arith.constant dense<0.000000e+00> : vector<8x256xf32>
    %145 = tpu.matmul %143, %144, %cst_46 {dimension_numbers = #tpu.dot_dimension_numbers<[1], [0], [0], [1], [0, 0, 1, 1], [], []>} : vector<8x128xbf16>, vector<128x256xbf16>, vector<8x256xf32> -> vector<8x256xf32>
    %146 = arith.addf %142, %145 : vector<8x256xf32>
    %147 = vector.extract_strided_slice %146 {offsets = [0, 0], sizes = [8, 128], strides = [1, 1]} : vector<8x256xf32> to vector<8x128xf32>
    %148 = math.tanh %147 : vector<8x128xf32>
    %149 = vector.extract_strided_slice %146 {offsets = [0, 128], sizes = [8, 128], strides = [1, 1]} : vector<8x256xf32> to vector<8x128xf32>
    %150 = math.tanh %149 : vector<8x128xf32>
    %cst_47 = arith.constant 5.000000e-01 : f32
    %151 = vector.broadcast %cst_47 : f32 to vector<8x128xf32>
    %152 = arith.mulf %151, %148 : vector<8x128xf32>
    %cst_48 = arith.constant 5.000000e-01 : f32
    %153 = vector.broadcast %cst_48 : f32 to vector<8x128xf32>
    %154 = arith.addf %152, %153 : vector<8x128xf32>
    %cst_49 = arith.constant 5.000000e-01 : f32
    %155 = vector.broadcast %cst_49 : f32 to vector<8x128xf32>
    %156 = arith.mulf %155, %150 : vector<8x128xf32>
    %cst_50 = arith.constant 5.000000e-01 : f32
    %157 = vector.broadcast %cst_50 : f32 to vector<8x128xf32>
    %158 = arith.addf %156, %157 : vector<8x128xf32>
    %159 = arith.select %4, %150, %158 : vector<8x128xi1>, vector<8x128xf32>
    %160 = arith.mulf %154, %159 : vector<8x128xf32>
    %c64_i32_51 = arith.constant 64 : i32
    %161 = tpu.dynamic_rotate %160 by %c64_i32_51 dim 1 : vector<8x128xf32>, i32 -> vector<8x128xf32>
    %162 = arith.mulf %154, %131 : vector<8x128xf32>
    %163 = arith.addf %161, %162 : vector<8x128xf32>
    %164 = math.tanh %163 : vector<8x128xf32>
    %165 = arith.mulf %159, %164 : vector<8x128xf32>
    %c5_i32 = arith.constant 5 : i32
    %c8_i32_52 = arith.constant 8 : i32
    %166 = arith.muli %c5_i32, %c8_i32_52 : i32
    %167 = tpu.assume_multiple %166, 8 : i32
    %168 = arith.index_cast %167 : i32 to index
    %c0_53 = arith.constant 0 : index
    %169 = vector.load %arg0[%168, %c0_53] : memref<128x1xf32, #tpu.memory_space<vmem>>, vector<8x1xf32>
    %170 = vector.broadcast %169 : vector<8x1xf32> to vector<8x256xf32>
    %171 = vector.broadcast %0 : vector<1x256xf32> to vector<8x256xf32>
    %172 = arith.mulf %170, %171 : vector<8x256xf32>
    %173 = vector.broadcast %1 : vector<1x256xf32> to vector<8x256xf32>
    %174 = arith.addf %172, %173 : vector<8x256xf32>
    %175 = arith.truncf %165 : vector<8x128xf32> to vector<8x128xbf16>
    %c0_54 = arith.constant 0 : index
    %c0_55 = arith.constant 0 : index
    %176 = vector.load %arg3[%c0_54, %c0_55] : memref<128x256xbf16, #tpu.memory_space<vmem>>, vector<128x256xbf16>
    %cst_56 = arith.constant dense<0.000000e+00> : vector<8x256xf32>
    %177 = tpu.matmul %175, %176, %cst_56 {dimension_numbers = #tpu.dot_dimension_numbers<[1], [0], [0], [1], [0, 0, 1, 1], [], []>} : vector<8x128xbf16>, vector<128x256xbf16>, vector<8x256xf32> -> vector<8x256xf32>
    %178 = arith.addf %174, %177 : vector<8x256xf32>
    %179 = vector.extract_strided_slice %178 {offsets = [0, 0], sizes = [8, 128], strides = [1, 1]} : vector<8x256xf32> to vector<8x128xf32>
    %180 = math.tanh %179 : vector<8x128xf32>
    %181 = vector.extract_strided_slice %178 {offsets = [0, 128], sizes = [8, 128], strides = [1, 1]} : vector<8x256xf32> to vector<8x128xf32>
    %182 = math.tanh %181 : vector<8x128xf32>
    %cst_57 = arith.constant 5.000000e-01 : f32
    %183 = vector.broadcast %cst_57 : f32 to vector<8x128xf32>
    %184 = arith.mulf %183, %180 : vector<8x128xf32>
    %cst_58 = arith.constant 5.000000e-01 : f32
    %185 = vector.broadcast %cst_58 : f32 to vector<8x128xf32>
    %186 = arith.addf %184, %185 : vector<8x128xf32>
    %cst_59 = arith.constant 5.000000e-01 : f32
    %187 = vector.broadcast %cst_59 : f32 to vector<8x128xf32>
    %188 = arith.mulf %187, %182 : vector<8x128xf32>
    %cst_60 = arith.constant 5.000000e-01 : f32
    %189 = vector.broadcast %cst_60 : f32 to vector<8x128xf32>
    %190 = arith.addf %188, %189 : vector<8x128xf32>
    %191 = arith.select %4, %182, %190 : vector<8x128xi1>, vector<8x128xf32>
    %192 = arith.mulf %186, %191 : vector<8x128xf32>
    %c64_i32_61 = arith.constant 64 : i32
    %193 = tpu.dynamic_rotate %192 by %c64_i32_61 dim 1 : vector<8x128xf32>, i32 -> vector<8x128xf32>
    %194 = arith.mulf %186, %163 : vector<8x128xf32>
    %195 = arith.addf %193, %194 : vector<8x128xf32>
    %196 = math.tanh %195 : vector<8x128xf32>
    %197 = arith.mulf %191, %196 : vector<8x128xf32>
    %c6_i32 = arith.constant 6 : i32
    %c8_i32_62 = arith.constant 8 : i32
    %198 = arith.muli %c6_i32, %c8_i32_62 : i32
    %199 = tpu.assume_multiple %198, 8 : i32
    %200 = arith.index_cast %199 : i32 to index
    %c0_63 = arith.constant 0 : index
    %201 = vector.load %arg0[%200, %c0_63] : memref<128x1xf32, #tpu.memory_space<vmem>>, vector<8x1xf32>
    %202 = vector.broadcast %201 : vector<8x1xf32> to vector<8x256xf32>
    %203 = vector.broadcast %0 : vector<1x256xf32> to vector<8x256xf32>
    %204 = arith.mulf %202, %203 : vector<8x256xf32>
    %205 = vector.broadcast %1 : vector<1x256xf32> to vector<8x256xf32>
    %206 = arith.addf %204, %205 : vector<8x256xf32>
    %207 = arith.truncf %197 : vector<8x128xf32> to vector<8x128xbf16>
    %c0_64 = arith.constant 0 : index
    %c0_65 = arith.constant 0 : index
    %208 = vector.load %arg3[%c0_64, %c0_65] : memref<128x256xbf16, #tpu.memory_space<vmem>>, vector<128x256xbf16>
    %cst_66 = arith.constant dense<0.000000e+00> : vector<8x256xf32>
    %209 = tpu.matmul %207, %208, %cst_66 {dimension_numbers = #tpu.dot_dimension_numbers<[1], [0], [0], [1], [0, 0, 1, 1], [], []>} : vector<8x128xbf16>, vector<128x256xbf16>, vector<8x256xf32> -> vector<8x256xf32>
    %210 = arith.addf %206, %209 : vector<8x256xf32>
    %211 = vector.extract_strided_slice %210 {offsets = [0, 0], sizes = [8, 128], strides = [1, 1]} : vector<8x256xf32> to vector<8x128xf32>
    %212 = math.tanh %211 : vector<8x128xf32>
    %213 = vector.extract_strided_slice %210 {offsets = [0, 128], sizes = [8, 128], strides = [1, 1]} : vector<8x256xf32> to vector<8x128xf32>
    %214 = math.tanh %213 : vector<8x128xf32>
    %cst_67 = arith.constant 5.000000e-01 : f32
    %215 = vector.broadcast %cst_67 : f32 to vector<8x128xf32>
    %216 = arith.mulf %215, %212 : vector<8x128xf32>
    %cst_68 = arith.constant 5.000000e-01 : f32
    %217 = vector.broadcast %cst_68 : f32 to vector<8x128xf32>
    %218 = arith.addf %216, %217 : vector<8x128xf32>
    %cst_69 = arith.constant 5.000000e-01 : f32
    %219 = vector.broadcast %cst_69 : f32 to vector<8x128xf32>
    %220 = arith.mulf %219, %214 : vector<8x128xf32>
    %cst_70 = arith.constant 5.000000e-01 : f32
    %221 = vector.broadcast %cst_70 : f32 to vector<8x128xf32>
    %222 = arith.addf %220, %221 : vector<8x128xf32>
    %223 = arith.select %4, %214, %222 : vector<8x128xi1>, vector<8x128xf32>
    %224 = arith.mulf %218, %223 : vector<8x128xf32>
    %c64_i32_71 = arith.constant 64 : i32
    %225 = tpu.dynamic_rotate %224 by %c64_i32_71 dim 1 : vector<8x128xf32>, i32 -> vector<8x128xf32>
    %226 = arith.mulf %218, %195 : vector<8x128xf32>
    %227 = arith.addf %225, %226 : vector<8x128xf32>
    %228 = math.tanh %227 : vector<8x128xf32>
    %229 = arith.mulf %223, %228 : vector<8x128xf32>
    %c7_i32 = arith.constant 7 : i32
    %c8_i32_72 = arith.constant 8 : i32
    %230 = arith.muli %c7_i32, %c8_i32_72 : i32
    %231 = tpu.assume_multiple %230, 8 : i32
    %232 = arith.index_cast %231 : i32 to index
    %c0_73 = arith.constant 0 : index
    %233 = vector.load %arg0[%232, %c0_73] : memref<128x1xf32, #tpu.memory_space<vmem>>, vector<8x1xf32>
    %234 = vector.broadcast %233 : vector<8x1xf32> to vector<8x256xf32>
    %235 = vector.broadcast %0 : vector<1x256xf32> to vector<8x256xf32>
    %236 = arith.mulf %234, %235 : vector<8x256xf32>
    %237 = vector.broadcast %1 : vector<1x256xf32> to vector<8x256xf32>
    %238 = arith.addf %236, %237 : vector<8x256xf32>
    %239 = arith.truncf %229 : vector<8x128xf32> to vector<8x128xbf16>
    %c0_74 = arith.constant 0 : index
    %c0_75 = arith.constant 0 : index
    %240 = vector.load %arg3[%c0_74, %c0_75] : memref<128x256xbf16, #tpu.memory_space<vmem>>, vector<128x256xbf16>
    %cst_76 = arith.constant dense<0.000000e+00> : vector<8x256xf32>
    %241 = tpu.matmul %239, %240, %cst_76 {dimension_numbers = #tpu.dot_dimension_numbers<[1], [0], [0], [1], [0, 0, 1, 1], [], []>} : vector<8x128xbf16>, vector<128x256xbf16>, vector<8x256xf32> -> vector<8x256xf32>
    %242 = arith.addf %238, %241 : vector<8x256xf32>
    %243 = vector.extract_strided_slice %242 {offsets = [0, 0], sizes = [8, 128], strides = [1, 1]} : vector<8x256xf32> to vector<8x128xf32>
    %244 = math.tanh %243 : vector<8x128xf32>
    %245 = vector.extract_strided_slice %242 {offsets = [0, 128], sizes = [8, 128], strides = [1, 1]} : vector<8x256xf32> to vector<8x128xf32>
    %246 = math.tanh %245 : vector<8x128xf32>
    %cst_77 = arith.constant 5.000000e-01 : f32
    %247 = vector.broadcast %cst_77 : f32 to vector<8x128xf32>
    %248 = arith.mulf %247, %244 : vector<8x128xf32>
    %cst_78 = arith.constant 5.000000e-01 : f32
    %249 = vector.broadcast %cst_78 : f32 to vector<8x128xf32>
    %250 = arith.addf %248, %249 : vector<8x128xf32>
    %cst_79 = arith.constant 5.000000e-01 : f32
    %251 = vector.broadcast %cst_79 : f32 to vector<8x128xf32>
    %252 = arith.mulf %251, %246 : vector<8x128xf32>
    %cst_80 = arith.constant 5.000000e-01 : f32
    %253 = vector.broadcast %cst_80 : f32 to vector<8x128xf32>
    %254 = arith.addf %252, %253 : vector<8x128xf32>
    %255 = arith.select %4, %246, %254 : vector<8x128xi1>, vector<8x128xf32>
    %256 = arith.mulf %250, %255 : vector<8x128xf32>
    %c64_i32_81 = arith.constant 64 : i32
    %257 = tpu.dynamic_rotate %256 by %c64_i32_81 dim 1 : vector<8x128xf32>, i32 -> vector<8x128xf32>
    %258 = arith.mulf %250, %227 : vector<8x128xf32>
    %259 = arith.addf %257, %258 : vector<8x128xf32>
    %260 = math.tanh %259 : vector<8x128xf32>
    %261 = arith.mulf %255, %260 : vector<8x128xf32>
    %c8_i32_82 = arith.constant 8 : i32
    %c8_i32_83 = arith.constant 8 : i32
    %262 = arith.muli %c8_i32_82, %c8_i32_83 : i32
    %263 = tpu.assume_multiple %262, 8 : i32
    %264 = arith.index_cast %263 : i32 to index
    %c0_84 = arith.constant 0 : index
    %265 = vector.load %arg0[%264, %c0_84] : memref<128x1xf32, #tpu.memory_space<vmem>>, vector<8x1xf32>
    %266 = vector.broadcast %265 : vector<8x1xf32> to vector<8x256xf32>
    %267 = vector.broadcast %0 : vector<1x256xf32> to vector<8x256xf32>
    %268 = arith.mulf %266, %267 : vector<8x256xf32>
    %269 = vector.broadcast %1 : vector<1x256xf32> to vector<8x256xf32>
    %270 = arith.addf %268, %269 : vector<8x256xf32>
    %271 = arith.truncf %261 : vector<8x128xf32> to vector<8x128xbf16>
    %c0_85 = arith.constant 0 : index
    %c0_86 = arith.constant 0 : index
    %272 = vector.load %arg3[%c0_85, %c0_86] : memref<128x256xbf16, #tpu.memory_space<vmem>>, vector<128x256xbf16>
    %cst_87 = arith.constant dense<0.000000e+00> : vector<8x256xf32>
    %273 = tpu.matmul %271, %272, %cst_87 {dimension_numbers = #tpu.dot_dimension_numbers<[1], [0], [0], [1], [0, 0, 1, 1], [], []>} : vector<8x128xbf16>, vector<128x256xbf16>, vector<8x256xf32> -> vector<8x256xf32>
    %274 = arith.addf %270, %273 : vector<8x256xf32>
    %275 = vector.extract_strided_slice %274 {offsets = [0, 0], sizes = [8, 128], strides = [1, 1]} : vector<8x256xf32> to vector<8x128xf32>
    %276 = math.tanh %275 : vector<8x128xf32>
    %277 = vector.extract_strided_slice %274 {offsets = [0, 128], sizes = [8, 128], strides = [1, 1]} : vector<8x256xf32> to vector<8x128xf32>
    %278 = math.tanh %277 : vector<8x128xf32>
    %cst_88 = arith.constant 5.000000e-01 : f32
    %279 = vector.broadcast %cst_88 : f32 to vector<8x128xf32>
    %280 = arith.mulf %279, %276 : vector<8x128xf32>
    %cst_89 = arith.constant 5.000000e-01 : f32
    %281 = vector.broadcast %cst_89 : f32 to vector<8x128xf32>
    %282 = arith.addf %280, %281 : vector<8x128xf32>
    %cst_90 = arith.constant 5.000000e-01 : f32
    %283 = vector.broadcast %cst_90 : f32 to vector<8x128xf32>
    %284 = arith.mulf %283, %278 : vector<8x128xf32>
    %cst_91 = arith.constant 5.000000e-01 : f32
    %285 = vector.broadcast %cst_91 : f32 to vector<8x128xf32>
    %286 = arith.addf %284, %285 : vector<8x128xf32>
    %287 = arith.select %4, %278, %286 : vector<8x128xi1>, vector<8x128xf32>
    %288 = arith.mulf %282, %287 : vector<8x128xf32>
    %c64_i32_92 = arith.constant 64 : i32
    %289 = tpu.dynamic_rotate %288 by %c64_i32_92 dim 1 : vector<8x128xf32>, i32 -> vector<8x128xf32>
    %290 = arith.mulf %282, %259 : vector<8x128xf32>
    %291 = arith.addf %289, %290 : vector<8x128xf32>
    %292 = math.tanh %291 : vector<8x128xf32>
    %293 = arith.mulf %287, %292 : vector<8x128xf32>
    %c9_i32 = arith.constant 9 : i32
    %c8_i32_93 = arith.constant 8 : i32
    %294 = arith.muli %c9_i32, %c8_i32_93 : i32
    %295 = tpu.assume_multiple %294, 8 : i32
    %296 = arith.index_cast %295 : i32 to index
    %c0_94 = arith.constant 0 : index
    %297 = vector.load %arg0[%296, %c0_94] : memref<128x1xf32, #tpu.memory_space<vmem>>, vector<8x1xf32>
    %298 = vector.broadcast %297 : vector<8x1xf32> to vector<8x256xf32>
    %299 = vector.broadcast %0 : vector<1x256xf32> to vector<8x256xf32>
    %300 = arith.mulf %298, %299 : vector<8x256xf32>
    %301 = vector.broadcast %1 : vector<1x256xf32> to vector<8x256xf32>
    %302 = arith.addf %300, %301 : vector<8x256xf32>
    %303 = arith.truncf %293 : vector<8x128xf32> to vector<8x128xbf16>
    %c0_95 = arith.constant 0 : index
    %c0_96 = arith.constant 0 : index
    %304 = vector.load %arg3[%c0_95, %c0_96] : memref<128x256xbf16, #tpu.memory_space<vmem>>, vector<128x256xbf16>
    %cst_97 = arith.constant dense<0.000000e+00> : vector<8x256xf32>
    %305 = tpu.matmul %303, %304, %cst_97 {dimension_numbers = #tpu.dot_dimension_numbers<[1], [0], [0], [1], [0, 0, 1, 1], [], []>} : vector<8x128xbf16>, vector<128x256xbf16>, vector<8x256xf32> -> vector<8x256xf32>
    %306 = arith.addf %302, %305 : vector<8x256xf32>
    %307 = vector.extract_strided_slice %306 {offsets = [0, 0], sizes = [8, 128], strides = [1, 1]} : vector<8x256xf32> to vector<8x128xf32>
    %308 = math.tanh %307 : vector<8x128xf32>
    %309 = vector.extract_strided_slice %306 {offsets = [0, 128], sizes = [8, 128], strides = [1, 1]} : vector<8x256xf32> to vector<8x128xf32>
    %310 = math.tanh %309 : vector<8x128xf32>
    %cst_98 = arith.constant 5.000000e-01 : f32
    %311 = vector.broadcast %cst_98 : f32 to vector<8x128xf32>
    %312 = arith.mulf %311, %308 : vector<8x128xf32>
    %cst_99 = arith.constant 5.000000e-01 : f32
    %313 = vector.broadcast %cst_99 : f32 to vector<8x128xf32>
    %314 = arith.addf %312, %313 : vector<8x128xf32>
    %cst_100 = arith.constant 5.000000e-01 : f32
    %315 = vector.broadcast %cst_100 : f32 to vector<8x128xf32>
    %316 = arith.mulf %315, %310 : vector<8x128xf32>
    %cst_101 = arith.constant 5.000000e-01 : f32
    %317 = vector.broadcast %cst_101 : f32 to vector<8x128xf32>
    %318 = arith.addf %316, %317 : vector<8x128xf32>
    %319 = arith.select %4, %310, %318 : vector<8x128xi1>, vector<8x128xf32>
    %320 = arith.mulf %314, %319 : vector<8x128xf32>
    %c64_i32_102 = arith.constant 64 : i32
    %321 = tpu.dynamic_rotate %320 by %c64_i32_102 dim 1 : vector<8x128xf32>, i32 -> vector<8x128xf32>
    %322 = arith.mulf %314, %291 : vector<8x128xf32>
    %323 = arith.addf %321, %322 : vector<8x128xf32>
    %324 = math.tanh %323 : vector<8x128xf32>
    %325 = arith.mulf %319, %324 : vector<8x128xf32>
    %c10_i32 = arith.constant 10 : i32
    %c8_i32_103 = arith.constant 8 : i32
    %326 = arith.muli %c10_i32, %c8_i32_103 : i32
    %327 = tpu.assume_multiple %326, 8 : i32
    %328 = arith.index_cast %327 : i32 to index
    %c0_104 = arith.constant 0 : index
    %329 = vector.load %arg0[%328, %c0_104] : memref<128x1xf32, #tpu.memory_space<vmem>>, vector<8x1xf32>
    %330 = vector.broadcast %329 : vector<8x1xf32> to vector<8x256xf32>
    %331 = vector.broadcast %0 : vector<1x256xf32> to vector<8x256xf32>
    %332 = arith.mulf %330, %331 : vector<8x256xf32>
    %333 = vector.broadcast %1 : vector<1x256xf32> to vector<8x256xf32>
    %334 = arith.addf %332, %333 : vector<8x256xf32>
    %335 = arith.truncf %325 : vector<8x128xf32> to vector<8x128xbf16>
    %c0_105 = arith.constant 0 : index
    %c0_106 = arith.constant 0 : index
    %336 = vector.load %arg3[%c0_105, %c0_106] : memref<128x256xbf16, #tpu.memory_space<vmem>>, vector<128x256xbf16>
    %cst_107 = arith.constant dense<0.000000e+00> : vector<8x256xf32>
    %337 = tpu.matmul %335, %336, %cst_107 {dimension_numbers = #tpu.dot_dimension_numbers<[1], [0], [0], [1], [0, 0, 1, 1], [], []>} : vector<8x128xbf16>, vector<128x256xbf16>, vector<8x256xf32> -> vector<8x256xf32>
    %338 = arith.addf %334, %337 : vector<8x256xf32>
    %339 = vector.extract_strided_slice %338 {offsets = [0, 0], sizes = [8, 128], strides = [1, 1]} : vector<8x256xf32> to vector<8x128xf32>
    %340 = math.tanh %339 : vector<8x128xf32>
    %341 = vector.extract_strided_slice %338 {offsets = [0, 128], sizes = [8, 128], strides = [1, 1]} : vector<8x256xf32> to vector<8x128xf32>
    %342 = math.tanh %341 : vector<8x128xf32>
    %cst_108 = arith.constant 5.000000e-01 : f32
    %343 = vector.broadcast %cst_108 : f32 to vector<8x128xf32>
    %344 = arith.mulf %343, %340 : vector<8x128xf32>
    %cst_109 = arith.constant 5.000000e-01 : f32
    %345 = vector.broadcast %cst_109 : f32 to vector<8x128xf32>
    %346 = arith.addf %344, %345 : vector<8x128xf32>
    %cst_110 = arith.constant 5.000000e-01 : f32
    %347 = vector.broadcast %cst_110 : f32 to vector<8x128xf32>
    %348 = arith.mulf %347, %342 : vector<8x128xf32>
    %cst_111 = arith.constant 5.000000e-01 : f32
    %349 = vector.broadcast %cst_111 : f32 to vector<8x128xf32>
    %350 = arith.addf %348, %349 : vector<8x128xf32>
    %351 = arith.select %4, %342, %350 : vector<8x128xi1>, vector<8x128xf32>
    %352 = arith.mulf %346, %351 : vector<8x128xf32>
    %c64_i32_112 = arith.constant 64 : i32
    %353 = tpu.dynamic_rotate %352 by %c64_i32_112 dim 1 : vector<8x128xf32>, i32 -> vector<8x128xf32>
    %354 = arith.mulf %346, %323 : vector<8x128xf32>
    %355 = arith.addf %353, %354 : vector<8x128xf32>
    %356 = math.tanh %355 : vector<8x128xf32>
    %357 = arith.mulf %351, %356 : vector<8x128xf32>
    %c11_i32 = arith.constant 11 : i32
    %c8_i32_113 = arith.constant 8 : i32
    %358 = arith.muli %c11_i32, %c8_i32_113 : i32
    %359 = tpu.assume_multiple %358, 8 : i32
    %360 = arith.index_cast %359 : i32 to index
    %c0_114 = arith.constant 0 : index
    %361 = vector.load %arg0[%360, %c0_114] : memref<128x1xf32, #tpu.memory_space<vmem>>, vector<8x1xf32>
    %362 = vector.broadcast %361 : vector<8x1xf32> to vector<8x256xf32>
    %363 = vector.broadcast %0 : vector<1x256xf32> to vector<8x256xf32>
    %364 = arith.mulf %362, %363 : vector<8x256xf32>
    %365 = vector.broadcast %1 : vector<1x256xf32> to vector<8x256xf32>
    %366 = arith.addf %364, %365 : vector<8x256xf32>
    %367 = arith.truncf %357 : vector<8x128xf32> to vector<8x128xbf16>
    %c0_115 = arith.constant 0 : index
    %c0_116 = arith.constant 0 : index
    %368 = vector.load %arg3[%c0_115, %c0_116] : memref<128x256xbf16, #tpu.memory_space<vmem>>, vector<128x256xbf16>
    %cst_117 = arith.constant dense<0.000000e+00> : vector<8x256xf32>
    %369 = tpu.matmul %367, %368, %cst_117 {dimension_numbers = #tpu.dot_dimension_numbers<[1], [0], [0], [1], [0, 0, 1, 1], [], []>} : vector<8x128xbf16>, vector<128x256xbf16>, vector<8x256xf32> -> vector<8x256xf32>
    %370 = arith.addf %366, %369 : vector<8x256xf32>
    %371 = vector.extract_strided_slice %370 {offsets = [0, 0], sizes = [8, 128], strides = [1, 1]} : vector<8x256xf32> to vector<8x128xf32>
    %372 = math.tanh %371 : vector<8x128xf32>
    %373 = vector.extract_strided_slice %370 {offsets = [0, 128], sizes = [8, 128], strides = [1, 1]} : vector<8x256xf32> to vector<8x128xf32>
    %374 = math.tanh %373 : vector<8x128xf32>
    %cst_118 = arith.constant 5.000000e-01 : f32
    %375 = vector.broadcast %cst_118 : f32 to vector<8x128xf32>
    %376 = arith.mulf %375, %372 : vector<8x128xf32>
    %cst_119 = arith.constant 5.000000e-01 : f32
    %377 = vector.broadcast %cst_119 : f32 to vector<8x128xf32>
    %378 = arith.addf %376, %377 : vector<8x128xf32>
    %cst_120 = arith.constant 5.000000e-01 : f32
    %379 = vector.broadcast %cst_120 : f32 to vector<8x128xf32>
    %380 = arith.mulf %379, %374 : vector<8x128xf32>
    %cst_121 = arith.constant 5.000000e-01 : f32
    %381 = vector.broadcast %cst_121 : f32 to vector<8x128xf32>
    %382 = arith.addf %380, %381 : vector<8x128xf32>
    %383 = arith.select %4, %374, %382 : vector<8x128xi1>, vector<8x128xf32>
    %384 = arith.mulf %378, %383 : vector<8x128xf32>
    %c64_i32_122 = arith.constant 64 : i32
    %385 = tpu.dynamic_rotate %384 by %c64_i32_122 dim 1 : vector<8x128xf32>, i32 -> vector<8x128xf32>
    %386 = arith.mulf %378, %355 : vector<8x128xf32>
    %387 = arith.addf %385, %386 : vector<8x128xf32>
    %388 = math.tanh %387 : vector<8x128xf32>
    %389 = arith.mulf %383, %388 : vector<8x128xf32>
    %c12_i32 = arith.constant 12 : i32
    %c8_i32_123 = arith.constant 8 : i32
    %390 = arith.muli %c12_i32, %c8_i32_123 : i32
    %391 = tpu.assume_multiple %390, 8 : i32
    %392 = arith.index_cast %391 : i32 to index
    %c0_124 = arith.constant 0 : index
    %393 = vector.load %arg0[%392, %c0_124] : memref<128x1xf32, #tpu.memory_space<vmem>>, vector<8x1xf32>
    %394 = vector.broadcast %393 : vector<8x1xf32> to vector<8x256xf32>
    %395 = vector.broadcast %0 : vector<1x256xf32> to vector<8x256xf32>
    %396 = arith.mulf %394, %395 : vector<8x256xf32>
    %397 = vector.broadcast %1 : vector<1x256xf32> to vector<8x256xf32>
    %398 = arith.addf %396, %397 : vector<8x256xf32>
    %399 = arith.truncf %389 : vector<8x128xf32> to vector<8x128xbf16>
    %c0_125 = arith.constant 0 : index
    %c0_126 = arith.constant 0 : index
    %400 = vector.load %arg3[%c0_125, %c0_126] : memref<128x256xbf16, #tpu.memory_space<vmem>>, vector<128x256xbf16>
    %cst_127 = arith.constant dense<0.000000e+00> : vector<8x256xf32>
    %401 = tpu.matmul %399, %400, %cst_127 {dimension_numbers = #tpu.dot_dimension_numbers<[1], [0], [0], [1], [0, 0, 1, 1], [], []>} : vector<8x128xbf16>, vector<128x256xbf16>, vector<8x256xf32> -> vector<8x256xf32>
    %402 = arith.addf %398, %401 : vector<8x256xf32>
    %403 = vector.extract_strided_slice %402 {offsets = [0, 0], sizes = [8, 128], strides = [1, 1]} : vector<8x256xf32> to vector<8x128xf32>
    %404 = math.tanh %403 : vector<8x128xf32>
    %405 = vector.extract_strided_slice %402 {offsets = [0, 128], sizes = [8, 128], strides = [1, 1]} : vector<8x256xf32> to vector<8x128xf32>
    %406 = math.tanh %405 : vector<8x128xf32>
    %cst_128 = arith.constant 5.000000e-01 : f32
    %407 = vector.broadcast %cst_128 : f32 to vector<8x128xf32>
    %408 = arith.mulf %407, %404 : vector<8x128xf32>
    %cst_129 = arith.constant 5.000000e-01 : f32
    %409 = vector.broadcast %cst_129 : f32 to vector<8x128xf32>
    %410 = arith.addf %408, %409 : vector<8x128xf32>
    %cst_130 = arith.constant 5.000000e-01 : f32
    %411 = vector.broadcast %cst_130 : f32 to vector<8x128xf32>
    %412 = arith.mulf %411, %406 : vector<8x128xf32>
    %cst_131 = arith.constant 5.000000e-01 : f32
    %413 = vector.broadcast %cst_131 : f32 to vector<8x128xf32>
    %414 = arith.addf %412, %413 : vector<8x128xf32>
    %415 = arith.select %4, %406, %414 : vector<8x128xi1>, vector<8x128xf32>
    %416 = arith.mulf %410, %415 : vector<8x128xf32>
    %c64_i32_132 = arith.constant 64 : i32
    %417 = tpu.dynamic_rotate %416 by %c64_i32_132 dim 1 : vector<8x128xf32>, i32 -> vector<8x128xf32>
    %418 = arith.mulf %410, %387 : vector<8x128xf32>
    %419 = arith.addf %417, %418 : vector<8x128xf32>
    %420 = math.tanh %419 : vector<8x128xf32>
    %421 = arith.mulf %415, %420 : vector<8x128xf32>
    %c13_i32 = arith.constant 13 : i32
    %c8_i32_133 = arith.constant 8 : i32
    %422 = arith.muli %c13_i32, %c8_i32_133 : i32
    %423 = tpu.assume_multiple %422, 8 : i32
    %424 = arith.index_cast %423 : i32 to index
    %c0_134 = arith.constant 0 : index
    %425 = vector.load %arg0[%424, %c0_134] : memref<128x1xf32, #tpu.memory_space<vmem>>, vector<8x1xf32>
    %426 = vector.broadcast %425 : vector<8x1xf32> to vector<8x256xf32>
    %427 = vector.broadcast %0 : vector<1x256xf32> to vector<8x256xf32>
    %428 = arith.mulf %426, %427 : vector<8x256xf32>
    %429 = vector.broadcast %1 : vector<1x256xf32> to vector<8x256xf32>
    %430 = arith.addf %428, %429 : vector<8x256xf32>
    %431 = arith.truncf %421 : vector<8x128xf32> to vector<8x128xbf16>
    %c0_135 = arith.constant 0 : index
    %c0_136 = arith.constant 0 : index
    %432 = vector.load %arg3[%c0_135, %c0_136] : memref<128x256xbf16, #tpu.memory_space<vmem>>, vector<128x256xbf16>
    %cst_137 = arith.constant dense<0.000000e+00> : vector<8x256xf32>
    %433 = tpu.matmul %431, %432, %cst_137 {dimension_numbers = #tpu.dot_dimension_numbers<[1], [0], [0], [1], [0, 0, 1, 1], [], []>} : vector<8x128xbf16>, vector<128x256xbf16>, vector<8x256xf32> -> vector<8x256xf32>
    %434 = arith.addf %430, %433 : vector<8x256xf32>
    %435 = vector.extract_strided_slice %434 {offsets = [0, 0], sizes = [8, 128], strides = [1, 1]} : vector<8x256xf32> to vector<8x128xf32>
    %436 = math.tanh %435 : vector<8x128xf32>
    %437 = vector.extract_strided_slice %434 {offsets = [0, 128], sizes = [8, 128], strides = [1, 1]} : vector<8x256xf32> to vector<8x128xf32>
    %438 = math.tanh %437 : vector<8x128xf32>
    %cst_138 = arith.constant 5.000000e-01 : f32
    %439 = vector.broadcast %cst_138 : f32 to vector<8x128xf32>
    %440 = arith.mulf %439, %436 : vector<8x128xf32>
    %cst_139 = arith.constant 5.000000e-01 : f32
    %441 = vector.broadcast %cst_139 : f32 to vector<8x128xf32>
    %442 = arith.addf %440, %441 : vector<8x128xf32>
    %cst_140 = arith.constant 5.000000e-01 : f32
    %443 = vector.broadcast %cst_140 : f32 to vector<8x128xf32>
    %444 = arith.mulf %443, %438 : vector<8x128xf32>
    %cst_141 = arith.constant 5.000000e-01 : f32
    %445 = vector.broadcast %cst_141 : f32 to vector<8x128xf32>
    %446 = arith.addf %444, %445 : vector<8x128xf32>
    %447 = arith.select %4, %438, %446 : vector<8x128xi1>, vector<8x128xf32>
    %448 = arith.mulf %442, %447 : vector<8x128xf32>
    %c64_i32_142 = arith.constant 64 : i32
    %449 = tpu.dynamic_rotate %448 by %c64_i32_142 dim 1 : vector<8x128xf32>, i32 -> vector<8x128xf32>
    %450 = arith.mulf %442, %419 : vector<8x128xf32>
    %451 = arith.addf %449, %450 : vector<8x128xf32>
    %452 = math.tanh %451 : vector<8x128xf32>
    %453 = arith.mulf %447, %452 : vector<8x128xf32>
    %c14_i32 = arith.constant 14 : i32
    %c8_i32_143 = arith.constant 8 : i32
    %454 = arith.muli %c14_i32, %c8_i32_143 : i32
    %455 = tpu.assume_multiple %454, 8 : i32
    %456 = arith.index_cast %455 : i32 to index
    %c0_144 = arith.constant 0 : index
    %457 = vector.load %arg0[%456, %c0_144] : memref<128x1xf32, #tpu.memory_space<vmem>>, vector<8x1xf32>
    %458 = vector.broadcast %457 : vector<8x1xf32> to vector<8x256xf32>
    %459 = vector.broadcast %0 : vector<1x256xf32> to vector<8x256xf32>
    %460 = arith.mulf %458, %459 : vector<8x256xf32>
    %461 = vector.broadcast %1 : vector<1x256xf32> to vector<8x256xf32>
    %462 = arith.addf %460, %461 : vector<8x256xf32>
    %463 = arith.truncf %453 : vector<8x128xf32> to vector<8x128xbf16>
    %c0_145 = arith.constant 0 : index
    %c0_146 = arith.constant 0 : index
    %464 = vector.load %arg3[%c0_145, %c0_146] : memref<128x256xbf16, #tpu.memory_space<vmem>>, vector<128x256xbf16>
    %cst_147 = arith.constant dense<0.000000e+00> : vector<8x256xf32>
    %465 = tpu.matmul %463, %464, %cst_147 {dimension_numbers = #tpu.dot_dimension_numbers<[1], [0], [0], [1], [0, 0, 1, 1], [], []>} : vector<8x128xbf16>, vector<128x256xbf16>, vector<8x256xf32> -> vector<8x256xf32>
    %466 = arith.addf %462, %465 : vector<8x256xf32>
    %467 = vector.extract_strided_slice %466 {offsets = [0, 0], sizes = [8, 128], strides = [1, 1]} : vector<8x256xf32> to vector<8x128xf32>
    %468 = math.tanh %467 : vector<8x128xf32>
    %469 = vector.extract_strided_slice %466 {offsets = [0, 128], sizes = [8, 128], strides = [1, 1]} : vector<8x256xf32> to vector<8x128xf32>
    %470 = math.tanh %469 : vector<8x128xf32>
    %cst_148 = arith.constant 5.000000e-01 : f32
    %471 = vector.broadcast %cst_148 : f32 to vector<8x128xf32>
    %472 = arith.mulf %471, %468 : vector<8x128xf32>
    %cst_149 = arith.constant 5.000000e-01 : f32
    %473 = vector.broadcast %cst_149 : f32 to vector<8x128xf32>
    %474 = arith.addf %472, %473 : vector<8x128xf32>
    %cst_150 = arith.constant 5.000000e-01 : f32
    %475 = vector.broadcast %cst_150 : f32 to vector<8x128xf32>
    %476 = arith.mulf %475, %470 : vector<8x128xf32>
    %cst_151 = arith.constant 5.000000e-01 : f32
    %477 = vector.broadcast %cst_151 : f32 to vector<8x128xf32>
    %478 = arith.addf %476, %477 : vector<8x128xf32>
    %479 = arith.select %4, %470, %478 : vector<8x128xi1>, vector<8x128xf32>
    %480 = arith.mulf %474, %479 : vector<8x128xf32>
    %c64_i32_152 = arith.constant 64 : i32
    %481 = tpu.dynamic_rotate %480 by %c64_i32_152 dim 1 : vector<8x128xf32>, i32 -> vector<8x128xf32>
    %482 = arith.mulf %474, %451 : vector<8x128xf32>
    %483 = arith.addf %481, %482 : vector<8x128xf32>
    %484 = math.tanh %483 : vector<8x128xf32>
    %485 = arith.mulf %479, %484 : vector<8x128xf32>
    %c15_i32 = arith.constant 15 : i32
    %c120_i32 = arith.constant 120 : i32
    %486 = tpu.assume_multiple %c120_i32, 8 : i32
    %487 = arith.index_cast %486 : i32 to index
    %c0_153 = arith.constant 0 : index
    %488 = vector.load %arg0[%487, %c0_153] : memref<128x1xf32, #tpu.memory_space<vmem>>, vector<8x1xf32>
    %489 = vector.broadcast %488 : vector<8x1xf32> to vector<8x256xf32>
    %490 = vector.broadcast %0 : vector<1x256xf32> to vector<8x256xf32>
    %491 = arith.mulf %489, %490 : vector<8x256xf32>
    %492 = vector.broadcast %1 : vector<1x256xf32> to vector<8x256xf32>
    %493 = arith.addf %491, %492 : vector<8x256xf32>
    %494 = arith.truncf %485 : vector<8x128xf32> to vector<8x128xbf16>
    %c0_154 = arith.constant 0 : index
    %c0_155 = arith.constant 0 : index
    %495 = vector.load %arg3[%c0_154, %c0_155] : memref<128x256xbf16, #tpu.memory_space<vmem>>, vector<128x256xbf16>
    %cst_156 = arith.constant dense<0.000000e+00> : vector<8x256xf32>
    %496 = tpu.matmul %494, %495, %cst_156 {dimension_numbers = #tpu.dot_dimension_numbers<[1], [0], [0], [1], [0, 0, 1, 1], [], []>} : vector<8x128xbf16>, vector<128x256xbf16>, vector<8x256xf32> -> vector<8x256xf32>
    %497 = arith.addf %493, %496 : vector<8x256xf32>
    %498 = vector.extract_strided_slice %497 {offsets = [0, 0], sizes = [8, 128], strides = [1, 1]} : vector<8x256xf32> to vector<8x128xf32>
    %499 = math.tanh %498 : vector<8x128xf32>
    %500 = vector.extract_strided_slice %497 {offsets = [0, 128], sizes = [8, 128], strides = [1, 1]} : vector<8x256xf32> to vector<8x128xf32>
    %501 = math.tanh %500 : vector<8x128xf32>
    %cst_157 = arith.constant 5.000000e-01 : f32
    %502 = vector.broadcast %cst_157 : f32 to vector<8x128xf32>
    %503 = arith.mulf %502, %499 : vector<8x128xf32>
    %cst_158 = arith.constant 5.000000e-01 : f32
    %504 = vector.broadcast %cst_158 : f32 to vector<8x128xf32>
    %505 = arith.addf %503, %504 : vector<8x128xf32>
    %cst_159 = arith.constant 5.000000e-01 : f32
    %506 = vector.broadcast %cst_159 : f32 to vector<8x128xf32>
    %507 = arith.mulf %506, %501 : vector<8x128xf32>
    %cst_160 = arith.constant 5.000000e-01 : f32
    %508 = vector.broadcast %cst_160 : f32 to vector<8x128xf32>
    %509 = arith.addf %507, %508 : vector<8x128xf32>
    %510 = arith.select %4, %501, %509 : vector<8x128xi1>, vector<8x128xf32>
    %511 = arith.mulf %505, %510 : vector<8x128xf32>
    %c64_i32_161 = arith.constant 64 : i32
    %512 = tpu.dynamic_rotate %511 by %c64_i32_161 dim 1 : vector<8x128xf32>, i32 -> vector<8x128xf32>
    %513 = arith.mulf %505, %483 : vector<8x128xf32>
    %514 = arith.addf %512, %513 : vector<8x128xf32>
    %c0_162 = arith.constant 0 : index
    %c0_163 = arith.constant 0 : index
    %515 = vector.load %arg4[%c0_162, %c0_163] : memref<128x128xf32, #tpu.memory_space<vmem>>, vector<128x128xf32>
    %cst_164 = arith.constant dense<0.000000e+00> : vector<8x128xf32>
    %516 = tpu.matmul %514, %515, %cst_164 {dimension_numbers = #tpu.dot_dimension_numbers<[1], [0], [0], [1], [0, 0, 1, 1], [], []>} : vector<8x128xf32>, vector<128x128xf32>, vector<8x128xf32> -> vector<8x128xf32>
    %c0_165 = arith.constant 0 : index
    %c0_166 = arith.constant 0 : index
    %517 = vector.load %arg5[%c0_165, %c0_166] : memref<1x128xf32, #tpu.memory_space<vmem>>, vector<1x128xf32>
    %518 = vector.broadcast %517 : vector<1x128xf32> to vector<8x128xf32>
    %519 = arith.addf %516, %518 : vector<8x128xf32>
    %c0_167 = arith.constant 0 : index
    %c0_168 = arith.constant 0 : index
    %520 = vector.load %arg6[%c0_167, %c0_168] : memref<8x128xf32, #tpu.memory_space<vmem>>, vector<8x128xf32>
    tpu.vector_store %arg6[%c0_167, %c0_168], %519 {strides = array<i32>} : memref<8x128xf32, #tpu.memory_space<vmem>>, vector<8x128xf32>,
    return
  }
}

</mosaic_0001>

<llo_original>
// kernel: tpu_custom_call.1
$region0: #{tpu_custom_call.1}
  #allocation0 [shape = 'u32[]', space=smem, size = 0x4, offset = 0x4, fixed_abs, tag = 'smem constant byte address 0x4 - core index']
  #allocation1 [shape = 'u32[144,128]{1,0:T(1,128)}', space=vmem, size = 0x12000, scoped, tag = 'internal scratch']
  %s0 = inlined_call_operand.vmem [shape: f32[128,1], index: 0, kind: input, shape index: {}]
  %s1 = inlined_call_operand.vmem [shape: f32[1,256], index: 1, kind: input, shape index: {}]
  %s2 = inlined_call_operand.vmem [shape: f32[1,256], index: 2, kind: input, shape index: {}]
  %s3 = inlined_call_operand.vmem [shape: bf16[128,256], index: 3, kind: input, shape index: {}]
  %s4 = inlined_call_operand.hbm [shape: f32[128,128], index: 4, kind: input, shape index: {}]
  %s5 = inlined_call_operand.vmem [shape: f32[1,128], index: 5, kind: input, shape index: {}]
  %s6 = inlined_call_operand.hbm [shape: f32[8,128], index: 6, kind: output, shape index: {}]
  %s7 = sld [smem:[#allocation0]]
  $region38: #{tpu_custom_call.1} parent=0
    _
  %s9 = ssub.s32 1, %s7
  %s10 = scalar_select 0, %s9, %s7
  $region1: #{tpu_custom_call.1} parent=0
    #allocation2 [shape = 'u8[65536]{0}', space=vmem, size = 0x10000, scoped, tag = 'input window, operand 4, single buffered']
    #allocation3 [shape = 's32[1]{0}', space=sflag, size = 0x4, scoped, tag = 'scoped memory for tpu_custom_call.1']
    #allocation4 [shape = 's32[1]{0}', space=sflag, size = 0x4, scoped, tag = 'scoped memory for tpu_custom_call.1']
    #allocation5 [shape = 'u8[4096]{0}', space=vmem, size = 0x1000, scoped, tag = 'output window, operand 0, single buffered']
    %11 = vsyncpa [#allocation3], 0
    %12 = vsyncpa [#allocation4], 0
    // Predicated region
    $region2: #{tpu_custom_call.1} parent=1 // pred_check
      _
    $region3: #{tpu_custom_call.1} parent=1 // pred_check_branch
      %14 = sbr.rel (0) target = $region5
    $region4: #{tpu_custom_call.1} parent=1 // pred_region
      _
    $region5: #{tpu_custom_call.1} parent=1 // pred_fallthru
      _
    // Predicated region
    $region6: #{tpu_custom_call.1} parent=1 // pred_check
      _
    $region7: #{tpu_custom_call.1} parent=1 // pred_check_branch
      %16 = sbr.rel (0) target = $region9
    $region8: #{tpu_custom_call.1} parent=1 // pred_region
      _
    $region9: #{tpu_custom_call.1} parent=1 // pred_fallthru
      _
    // Predicated region
    $region10: #{tpu_custom_call.1} parent=1 // pred_check
      _
    $region11: #{tpu_custom_call.1} parent=1 // pred_check_branch
      %18 = sbr.rel (0) target = $region13
    $region12: #{tpu_custom_call.1} parent=1 // pred_region
      _
    $region13: #{tpu_custom_call.1} parent=1 // pred_fallthru
      _
    // Predicated region
    $region14: #{tpu_custom_call.1} parent=1 // pred_check
      _
    $region15: #{tpu_custom_call.1} parent=1 // pred_check_branch
      %20 = sbr.rel (0) target = $region17
    $region16: #{tpu_custom_call.1} parent=1 // pred_region
      _
    $region17: #{tpu_custom_call.1} parent=1 // pred_fallthru
      _
    // Predicated region
    $region18: #{tpu_custom_call.1} parent=1 // pred_check
      _
    $region19: #{tpu_custom_call.1} parent=1 // pred_check_branch
      %22 = sbr.rel (0) target = $region21
    $region20: #{tpu_custom_call.1} parent=1 // pred_region
      %s24 = ssub.s32 2048, 2048
      %25 = vsyncadd [#allocation3], %s24
      %s26 = sshll.u32 [#allocation2], 4
      %s27 = int_to_ptr.vmem [resolvable:$true] %s26
      %32 = dma.hbm_to_vmem [thread:$0]  %s4, 2048, %s27, [#allocation3], 128, 128, 8
    $region21: #{tpu_custom_call.1} parent=1 // pred_fallthru
      _
    // Predicated region
    $region22: #{tpu_custom_call.1} parent=1 // pred_check
      _
    $region23: #{tpu_custom_call.1} parent=1 // pred_check_branch
      %34 = sbr.rel (0) target = $region25
    $region24: #{tpu_custom_call.1} parent=1 // pred_region
      _
    $region25: #{tpu_custom_call.1} parent=1 // pred_fallthru
      _
    // Predicated region
    $region26: #{tpu_custom_call.1} parent=1 // pred_check
      _
    $region27: #{tpu_custom_call.1} parent=1 // pred_check_branch
      %36 = sbr.rel (0) target = $region29
    $region28: #{tpu_custom_call.1} parent=1 // pred_region
      %37 = dma.done [#allocation3], 2048
    $region29: #{tpu_custom_call.1} parent=1 // pred_fallthru
      _
    %v39 = vld [vmem:[%s1] sm:$0x3]
    %v40 = vld [vmem:[%s2] sm:$0x3]
    %v41 = vlaneseq
    %v42 = vand.u32 %v41, 127
    %vm43 = vcmp.lt.s32.totalorder %v42, 64
    %v44 = vld [vmem:[%s0] sm:$0xff]
    %46 = vset.pattern.permute.xlu0 0
    %47 = vperm.xlu0 %46, %v44
    %v48 = vpop.permute.xlu0 %47
    %v51 = vlaneseq
    %v52 = vshrl.u32 %v51, 7
    %v53 = vsub.s32 0, %v52
    %v54 = vrot.slane %v39, %v53
    %v55 = vlaneseq
    %v56 = vshrl.u32 %v55, 7
    %v57 = vsub.s32 1, %v56
    %v58 = vrot.slane %v39, %v57
    %v61 = vmul.f32 %v48, %v54
    %v62 = vmul.f32 %v48, %v58
    %v64 = vlaneseq
    %v65 = vshrl.u32 %v64, 7
    %v66 = vsub.s32 0, %v65
    %v67 = vrot.slane %v40, %v66
    %v68 = vlaneseq
    %v69 = vshrl.u32 %v68, 7
    %v70 = vsub.s32 1, %v69
    %v71 = vrot.slane %v40, %v70
    %v74 = vadd.f32 %v61, %v67
    %v75 = vadd.f32 %v62, %v71
    %v76 = vld [vmem:[%s3] sm:$0xff]
    %v77 = vld [vmem:[%s3 + $0x8] sm:$0xff]
    %v78 = vld [vmem:[%s3 + $0x10] sm:$0xff]
    %v79 = vld [vmem:[%s3 + $0x18] sm:$0xff]
    %v80 = vld [vmem:[%s3 + $0x20] sm:$0xff]
    %v81 = vld [vmem:[%s3 + $0x28] sm:$0xff]
    %v82 = vld [vmem:[%s3 + $0x30] sm:$0xff]
    %v83 = vld [vmem:[%s3 + $0x38] sm:$0xff]
    %v84 = vld [vmem:[%s3 + $0x40] sm:$0xff]
    %v85 = vld [vmem:[%s3 + $0x48] sm:$0xff]
    %v86 = vld [vmem:[%s3 + $0x50] sm:$0xff]
    %v87 = vld [vmem:[%s3 + $0x58] sm:$0xff]
    %v88 = vld [vmem:[%s3 + $0x60] sm:$0xff]
    %v89 = vld [vmem:[%s3 + $0x68] sm:$0xff]
    %v90 = vld [vmem:[%s3 + $0x70] sm:$0xff]
    %v91 = vld [vmem:[%s3 + $0x78] sm:$0xff]
    %v108 = vunpack.c.l.b16 %v76
    %v109 = vunpack.c.h.b16 %v76
    %v110 = vunpack.c.l.b16 %v77
    %v111 = vunpack.c.h.b16 %v77
    %v112 = vunpack.c.l.b16 %v78
    %v113 = vunpack.c.h.b16 %v78
    %v114 = vunpack.c.l.b16 %v79
    %v115 = vunpack.c.h.b16 %v79
    %v116 = vunpack.c.l.b16 %v80
    %v117 = vunpack.c.h.b16 %v80
    %v118 = vunpack.c.l.b16 %v81
    %v119 = vunpack.c.h.b16 %v81
    %v120 = vunpack.c.l.b16 %v82
    %v121 = vunpack.c.h.b16 %v82
    %v122 = vunpack.c.l.b16 %v83
    %v123 = vunpack.c.h.b16 %v83
    %v124 = vunpack.c.l.b16 %v84
    %v125 = vunpack.c.h.b16 %v84
    %v126 = vunpack.c.l.b16 %v85
    %v127 = vunpack.c.h.b16 %v85
    %v128 = vunpack.c.l.b16 %v86
    %v129 = vunpack.c.h.b16 %v86
    %v130 = vunpack.c.l.b16 %v87
    %v131 = vunpack.c.h.b16 %v87
    %v132 = vunpack.c.l.b16 %v88
    %v133 = vunpack.c.h.b16 %v88
    %v134 = vunpack.c.l.b16 %v89
    %v135 = vunpack.c.h.b16 %v89
    %v136 = vunpack.c.l.b16 %v90
    %v137 = vunpack.c.h.b16 %v90
    %v138 = vunpack.c.l.b16 %v91
    %v139 = vunpack.c.h.b16 %v91
    %v140 = vpack.c.b16 %v110, %v108
    %v141 = vpack.c.b16 %v111, %v109
    %v142 = vpack.c.b16 %v114, %v112
    %v143 = vpack.c.b16 %v115, %v113
    %v144 = vpack.c.b16 %v118, %v116
    %v145 = vpack.c.b16 %v119, %v117
    %v146 = vpack.c.b16 %v122, %v120
    %v147 = vpack.c.b16 %v123, %v121
    %v148 = vpack.c.b16 %v126, %v124
    %v149 = vpack.c.b16 %v127, %v125
    %v150 = vpack.c.b16 %v130, %v128
    %v151 = vpack.c.b16 %v131, %v129
    %v152 = vpack.c.b16 %v134, %v132
    %v153 = vpack.c.b16 %v135, %v133
    %v154 = vpack.c.b16 %v138, %v136
    %v155 = vpack.c.b16 %v139, %v137
    %172 = vmatprep.subr.bf16.mxu0 %v141
    %173 = vmatpush1.bf16.msra.mxu0 %v140
    %174 = vmatprep.subr.bf16.mxu0 %v143
    %175 = vmatpush1.bf16.msra.mxu0 %v142
    %176 = vmatprep.subr.bf16.mxu0 %v145
    %177 = vmatpush1.bf16.msra.mxu0 %v144
    %178 = vmatprep.subr.bf16.mxu0 %v147
    %179 = vmatpush1.bf16.msra.mxu0 %v146
    %180 = vmatprep.subr.bf16.mxu0 %v149
    %181 = vmatpush1.bf16.msra.mxu0 %v148
    %182 = vmatprep.subr.bf16.mxu0 %v151
    %183 = vmatpush1.bf16.msra.mxu0 %v150
    %184 = vmatprep.subr.bf16.mxu0 %v153
    %185 = vmatpush1.bf16.msra.mxu0 %v152
    %186 = vmatprep.subr.bf16.mxu0 %v155
    %187 = vmatpush1.bf16.msra.mxu0 %v154
    %188 = vmatprep.subr.bf16.mxu0 0
    %189 = vmatpush1.bf16.msra.mxu0 0
    %190 = vmatprep.subr.bf16.mxu0 0
    %191 = vmatpush1.bf16.msra.mxu0 0
    %192 = vmatprep.subr.bf16.mxu0 0
    %193 = vmatpush1.bf16.msra.mxu0 0
    %194 = vmatprep.subr.bf16.mxu0 0
    %195 = vmatpush1.bf16.msra.mxu0 0
    %196 = vmatprep.subr.bf16.mxu0 0
    %197 = vmatpush1.bf16.msra.mxu0 0
    %198 = vmatprep.subr.bf16.mxu0 0
    %199 = vmatpush1.bf16.msra.mxu0 0
    %200 = vmatprep.subr.bf16.mxu0 0
    %201 = vmatpush1.bf16.msra.mxu0 0
    %202 = vmatprep.subr.bf16.mxu0 0
    %203 = vmatpush1.bf16.msra.mxu0 0
    %204 = vmatprep.mubr.bf16.mxu0 0
    %205 = vmatmul.mubr.bf16.gmra.mrb[0].mxu0 0
    %v206 = vpop.f32.mrb[0].mxu0
    %v207 = vadd.f32 0.0, %v206
    %v208 = vpop.f32.mrb[0].mxu0
    %v209 = vadd.f32 0.0, %v208
    %v210 = vpop.f32.mrb[0].mxu0
    %v211 = vpop.f32.mrb[0].mxu0
    %212 = vdwg.mxu0
    %v213 = vadd.f32 %v74, %v207
    %v214 = vadd.f32 %v75, %v209
    %v215 = vtanh.pop %v213
    %v216 = vtanh.pop %v214
    %v217 = vmul.f32 %v215, 0.5
    %v218 = vadd.f32 %v217, 0.5
    %v219 = vmul.f32 %v216, 0.5
    %v220 = vadd.f32 %v219, 0.5
    %v221 = vsel %vm43, %v216, %v220
    %v222 = vmul.f32 %v218, %v221
    %223 = vrot.lane.b32.xlu0 %v222, 64
    %v224 = vpop.permute.xlu0 %223
    %v225 = vmul.f32 %v218, 0.0
    %v226 = vadd.f32 %v224, %v225
    %v227 = vtanh.pop %v226
    %v228 = vmul.f32 %v221, %v227
    %s229 = scalar_lea.vmem %s0, 8
    %v230 = vld [vmem:[%s229] sm:$0xff]
    %232 = vset.pattern.permute.xlu0 0
    %233 = vperm.xlu0 %232, %v230
    %v234 = vpop.permute.xlu0 %233
    %v236 = vmul.f32 %v234, %v54
    %v237 = vmul.f32 %v234, %v58
    %v238 = vadd.f32 %v236, %v67
    %v239 = vadd.f32 %v237, %v71
    %v240 = vpack.c.bf16 %v228, %v228
    %241 = vmatprep.subr.bf16.mxu0 %v141
    %242 = vmatpush1.bf16.msra.mxu0 %v140
    %243 = vmatprep.subr.bf16.mxu0 %v143
    %244 = vmatpush1.bf16.msra.mxu0 %v142
    %245 = vmatprep.subr.bf16.mxu0 %v145
    %246 = vmatpush1.bf16.msra.mxu0 %v144
    %247 = vmatprep.subr.bf16.mxu0 %v147
    %248 = vmatpush1.bf16.msra.mxu0 %v146
    %249 = vmatprep.subr.bf16.mxu0 %v149
    %250 = vmatpush1.bf16.msra.mxu0 %v148
    %251 = vmatprep.subr.bf16.mxu0 %v151
    %252 = vmatpush1.bf16.msra.mxu0 %v150
    %253 = vmatprep.subr.bf16.mxu0 %v153
    %254 = vmatpush1.bf16.msra.mxu0 %v152
    %255 = vmatprep.subr.bf16.mxu0 %v155
    %256 = vmatpush1.bf16.msra.mxu0 %v154
    %257 = vmatprep.subr.bf16.mxu0 0
    %258 = vmatpush1.bf16.msra.mxu0 0
    %259 = vmatprep.subr.bf16.mxu0 0
    %260 = vmatpush1.bf16.msra.mxu0 0
    %261 = vmatprep.subr.bf16.mxu0 0
    %262 = vmatpush1.bf16.msra.mxu0 0
    %263 = vmatprep.subr.bf16.mxu0 0
    %264 = vmatpush1.bf16.msra.mxu0 0
    %265 = vmatprep.subr.bf16.mxu0 0
    %266 = vmatpush1.bf16.msra.mxu0 0
    %267 = vmatprep.subr.bf16.mxu0 0
    %268 = vmatpush1.bf16.msra.mxu0 0
    %269 = vmatprep.subr.bf16.mxu0 0
    %270 = vmatpush1.bf16.msra.mxu0 0
    %271 = vmatprep.subr.bf16.mxu0 0
    %272 = vmatpush1.bf16.msra.mxu0 0
    %273 = vmatprep.mubr.bf16.mxu0 0
    %274 = vmatmul.mubr.bf16.gmra.mrb[0].mxu0 %v240
    %v275 = vpop.f32.mrb[0].mxu0
    %v276 = vadd.f32 0.0, %v275
    %v277 = vpop.f32.mrb[0].mxu0
    %v278 = vadd.f32 0.0, %v277
    %v279 = vpop.f32.mrb[0].mxu0
    %v280 = vpop.f32.mrb[0].mxu0
    %281 = vdwg.mxu0
    %v282 = vadd.f32 %v238, %v276
    %v283 = vadd.f32 %v239, %v278
    %v284 = vtanh.pop %v282
    %v285 = vtanh.pop %v283
    %v286 = vmul.f32 %v284, 0.5
    %v287 = vadd.f32 %v286, 0.5
    %v288 = vmul.f32 %v285, 0.5
    %v289 = vadd.f32 %v288, 0.5
    %v290 = vsel %vm43, %v285, %v289
    %v291 = vmul.f32 %v287, %v290
    %292 = vrot.lane.b32.xlu0 %v291, 64
    %v293 = vpop.permute.xlu0 %292
    %v294 = vmul.f32 %v287, %v226
    %v295 = vadd.f32 %v293, %v294
    %v296 = vtanh.pop %v295
    %v297 = vmul.f32 %v290, %v296
    %s298 = scalar_lea.vmem %s0, 16
    %v299 = vld [vmem:[%s298] sm:$0xff]
    %301 = vset.pattern.permute.xlu0 0
    %302 = vperm.xlu0 %301, %v299
    %v303 = vpop.permute.xlu0 %302
    %v305 = vmul.f32 %v303, %v54
    %v306 = vmul.f32 %v303, %v58
    %v307 = vadd.f32 %v305, %v67
    %v308 = vadd.f32 %v306, %v71
    %v309 = vpack.c.bf16 %v297, %v297
    %310 = vmatprep.subr.bf16.mxu0 %v141
    %311 = vmatpush1.bf16.msra.mxu0 %v140
    %312 = vmatprep.subr.bf16.mxu0 %v143
    %313 = vmatpush1.bf16.msra.mxu0 %v142
    %314 = vmatprep.subr.bf16.mxu0 %v145
    %315 = vmatpush1.bf16.msra.mxu0 %v144
    %316 = vmatprep.subr.bf16.mxu0 %v147
    %317 = vmatpush1.bf16.msra.mxu0 %v146
    %318 = vmatprep.subr.bf16.mxu0 %v149
    %319 = vmatpush1.bf16.msra.mxu0 %v148
    %320 = vmatprep.subr.bf16.mxu0 %v151
    %321 = vmatpush1.bf16.msra.mxu0 %v150
    %322 = vmatprep.subr.bf16.mxu0 %v153
    %323 = vmatpush1.bf16.msra.mxu0 %v152
    %324 = vmatprep.subr.bf16.mxu0 %v155
    %325 = vmatpush1.bf16.msra.mxu0 %v154
    %326 = vmatprep.subr.bf16.mxu0 0
    %327 = vmatpush1.bf16.msra.mxu0 0
    %328 = vmatprep.subr.bf16.mxu0 0
    %329 = vmatpush1.bf16.msra.mxu0 0
    %330 = vmatprep.subr.bf16.mxu0 0
    %331 = vmatpush1.bf16.msra.mxu0 0
    %332 = vmatprep.subr.bf16.mxu0 0
    %333 = vmatpush1.bf16.msra.mxu0 0
    %334 = vmatprep.subr.bf16.mxu0 0
    %335 = vmatpush1.bf16.msra.mxu0 0
    %336 = vmatprep.subr.bf16.mxu0 0
    %337 = vmatpush1.bf16.msra.mxu0 0
    %338 = vmatprep.subr.bf16.mxu0 0
    %339 = vmatpush1.bf16.msra.mxu0 0
    %340 = vmatprep.subr.bf16.mxu0 0
    %341 = vmatpush1.bf16.msra.mxu0 0
    %342 = vmatprep.mubr.bf16.mxu0 0
    %343 = vmatmul.mubr.bf16.gmra.mrb[0].mxu0 %v309
    %v344 = vpop.f32.mrb[0].mxu0
    %v345 = vadd.f32 0.0, %v344
    %v346 = vpop.f32.mrb[0].mxu0
    %v347 = vadd.f32 0.0, %v346
    %v348 = vpop.f32.mrb[0].mxu0
    %v349 = vpop.f32.mrb[0].mxu0
    %350 = vdwg.mxu0
    %v351 = vadd.f32 %v307, %v345
    %v352 = vadd.f32 %v308, %v347
    %v353 = vtanh.pop %v351
    %v354 = vtanh.pop %v352
    %v355 = vmul.f32 %v353, 0.5
    %v356 = vadd.f32 %v355, 0.5
    %v357 = vmul.f32 %v354, 0.5
    %v358 = vadd.f32 %v357, 0.5
    %v359 = vsel %vm43, %v354, %v358
    %v360 = vmul.f32 %v356, %v359
    %361 = vrot.lane.b32.xlu0 %v360, 64
    %v362 = vpop.permute.xlu0 %361
    %v363 = vmul.f32 %v356, %v295
    %v364 = vadd.f32 %v362, %v363
    %v365 = vtanh.pop %v364
    %v366 = vmul.f32 %v359, %v365
    %s367 = scalar_lea.vmem %s0, 24
    %v368 = vld [vmem:[%s367] sm:$0xff]
    %370 = vset.pattern.permute.xlu0 0
    %371 = vperm.xlu0 %370, %v368
    %v372 = vpop.permute.xlu0 %371
    %v374 = vmul.f32 %v372, %v54
    %v375 = vmul.f32 %v372, %v58
    %v376 = vadd.f32 %v374, %v67
    %v377 = vadd.f32 %v375, %v71
    %v378 = vpack.c.bf16 %v366, %v366
    %379 = vmatprep.subr.bf16.mxu0 %v141
    %380 = vmatpush1.bf16.msra.mxu0 %v140
    %381 = vmatprep.subr.bf16.mxu0 %v143
    %382 = vmatpush1.bf16.msra.mxu0 %v142
    %383 = vmatprep.subr.bf16.mxu0 %v145
    %384 = vmatpush1.bf16.msra.mxu0 %v144
    %385 = vmatprep.subr.bf16.mxu0 %v147
    %386 = vmatpush1.bf16.msra.mxu0 %v146
    %387 = vmatprep.subr.bf16.mxu0 %v149
    %388 = vmatpush1.bf16.msra.mxu0 %v148
    %389 = vmatprep.subr.bf16.mxu0 %v151
    %390 = vmatpush1.bf16.msra.mxu0 %v150
    %391 = vmatprep.subr.bf16.mxu0 %v153
    %392 = vmatpush1.bf16.msra.mxu0 %v152
    %393 = vmatprep.subr.bf16.mxu0 %v155
    %394 = vmatpush1.bf16.msra.mxu0 %v154
    %395 = vmatprep.subr.bf16.mxu0 0
    %396 = vmatpush1.bf16.msra.mxu0 0
    %397 = vmatprep.subr.bf16.mxu0 0
    %398 = vmatpush1.bf16.msra.mxu0 0
    %399 = vmatprep.subr.bf16.mxu0 0
    %400 = vmatpush1.bf16.msra.mxu0 0
    %401 = vmatprep.subr.bf16.mxu0 0
    %402 = vmatpush1.bf16.msra.mxu0 0
    %403 = vmatprep.subr.bf16.mxu0 0
    %404 = vmatpush1.bf16.msra.mxu0 0
    %405 = vmatprep.subr.bf16.mxu0 0
    %406 = vmatpush1.bf16.msra.mxu0 0
    %407 = vmatprep.subr.bf16.mxu0 0
    %408 = vmatpush1.bf16.msra.mxu0 0
    %409 = vmatprep.subr.bf16.mxu0 0
    %410 = vmatpush1.bf16.msra.mxu0 0
    %411 = vmatprep.mubr.bf16.mxu0 0
    %412 = vmatmul.mubr.bf16.gmra.mrb[0].mxu0 %v378
    %v413 = vpop.f32.mrb[0].mxu0
    %v414 = vadd.f32 0.0, %v413
    %v415 = vpop.f32.mrb[0].mxu0
    %v416 = vadd.f32 0.0, %v415
    %v417 = vpop.f32.mrb[0].mxu0
    %v418 = vpop.f32.mrb[0].mxu0
    %419 = vdwg.mxu0
    %v420 = vadd.f32 %v376, %v414
    %v421 = vadd.f32 %v377, %v416
    %v422 = vtanh.pop %v420
    %v423 = vtanh.pop %v421
    %v424 = vmul.f32 %v422, 0.5
    %v425 = vadd.f32 %v424, 0.5
    %v426 = vmul.f32 %v423, 0.5
    %v427 = vadd.f32 %v426, 0.5
    %v428 = vsel %vm43, %v423, %v427
    %v429 = vmul.f32 %v425, %v428
    %430 = vrot.lane.b32.xlu0 %v429, 64
    %v431 = vpop.permute.xlu0 %430
    %v432 = vmul.f32 %v425, %v364
    %v433 = vadd.f32 %v431, %v432
    %v434 = vtanh.pop %v433
    %v435 = vmul.f32 %v428, %v434
    %s436 = scalar_lea.vmem %s0, 32
    %v437 = vld [vmem:[%s436] sm:$0xff]
    %439 = vset.pattern.permute.xlu0 0
    %440 = vperm.xlu0 %439, %v437
    %v441 = vpop.permute.xlu0 %440
    %v443 = vmul.f32 %v441, %v54
    %v444 = vmul.f32 %v441, %v58
    %v445 = vadd.f32 %v443, %v67
    %v446 = vadd.f32 %v444, %v71
    %v447 = vpack.c.bf16 %v435, %v435
    %448 = vmatprep.subr.bf16.mxu0 %v141
    %449 = vmatpush1.bf16.msra.mxu0 %v140
    %450 = vmatprep.subr.bf16.mxu0 %v143
    %451 = vmatpush1.bf16.msra.mxu0 %v142
    %452 = vmatprep.subr.bf16.mxu0 %v145
    %453 = vmatpush1.bf16.msra.mxu0 %v144
    %454 = vmatprep.subr.bf16.mxu0 %v147
    %455 = vmatpush1.bf16.msra.mxu0 %v146
    %456 = vmatprep.subr.bf16.mxu0 %v149
    %457 = vmatpush1.bf16.msra.mxu0 %v148
    %458 = vmatprep.subr.bf16.mxu0 %v151
    %459 = vmatpush1.bf16.msra.mxu0 %v150
    %460 = vmatprep.subr.bf16.mxu0 %v153
    %461 = vmatpush1.bf16.msra.mxu0 %v152
    %462 = vmatprep.subr.bf16.mxu0 %v155
    %463 = vmatpush1.bf16.msra.mxu0 %v154
    %464 = vmatprep.subr.bf16.mxu0 0
    %465 = vmatpush1.bf16.msra.mxu0 0
    %466 = vmatprep.subr.bf16.mxu0 0
    %467 = vmatpush1.bf16.msra.mxu0 0
    %468 = vmatprep.subr.bf16.mxu0 0
    %469 = vmatpush1.bf16.msra.mxu0 0
    %470 = vmatprep.subr.bf16.mxu0 0
    %471 = vmatpush1.bf16.msra.mxu0 0
    %472 = vmatprep.subr.bf16.mxu0 0
    %473 = vmatpush1.bf16.msra.mxu0 0
    %474 = vmatprep.subr.bf16.mxu0 0
    %475 = vmatpush1.bf16.msra.mxu0 0
    %476 = vmatprep.subr.bf16.mxu0 0
    %477 = vmatpush1.bf16.msra.mxu0 0
    %478 = vmatprep.subr.bf16.mxu0 0
    %479 = vmatpush1.bf16.msra.mxu0 0
    %480 = vmatprep.mubr.bf16.mxu0 0
    %481 = vmatmul.mubr.bf16.gmra.mrb[0].mxu0 %v447
    %v482 = vpop.f32.mrb[0].mxu0
    %v483 = vadd.f32 0.0, %v482
    %v484 = vpop.f32.mrb[0].mxu0
    %v485 = vadd.f32 0.0, %v484
    %v486 = vpop.f32.mrb[0].mxu0
    %v487 = vpop.f32.mrb[0].mxu0
    %488 = vdwg.mxu0
    %v489 = vadd.f32 %v445, %v483
    %v490 = vadd.f32 %v446, %v485
    %v491 = vtanh.pop %v489
    %v492 = vtanh.pop %v490
    %v493 = vmul.f32 %v491, 0.5
    %v494 = vadd.f32 %v493, 0.5
    %v495 = vmul.f32 %v492, 0.5
    %v496 = vadd.f32 %v495, 0.5
    %v497 = vsel %vm43, %v492, %v496
    %v498 = vmul.f32 %v494, %v497
    %499 = vrot.lane.b32.xlu0 %v498, 64
    %v500 = vpop.permute.xlu0 %499
    %v501 = vmul.f32 %v494, %v433
    %v502 = vadd.f32 %v500, %v501
    %v503 = vtanh.pop %v502
    %v504 = vmul.f32 %v497, %v503
    %s505 = scalar_lea.vmem %s0, 40
    %v506 = vld [vmem:[%s505] sm:$0xff]
    %508 = vset.pattern.permute.xlu0 0
    %509 = vperm.xlu0 %508, %v506
    %v510 = vpop.permute.xlu0 %509
    %v512 = vmul.f32 %v510, %v54
    %v513 = vmul.f32 %v510, %v58
    %v514 = vadd.f32 %v512, %v67
    %v515 = vadd.f32 %v513, %v71
    %v516 = vpack.c.bf16 %v504, %v504
    %517 = vmatprep.subr.bf16.mxu0 %v141
    %518 = vmatpush1.bf16.msra.mxu0 %v140
    %519 = vmatprep.subr.bf16.mxu0 %v143
    %520 = vmatpush1.bf16.msra.mxu0 %v142
    %521 = vmatprep.subr.bf16.mxu0 %v145
    %522 = vmatpush1.bf16.msra.mxu0 %v144
    %523 = vmatprep.subr.bf16.mxu0 %v147
    %524 = vmatpush1.bf16.msra.mxu0 %v146
    %525 = vmatprep.subr.bf16.mxu0 %v149
    %526 = vmatpush1.bf16.msra.mxu0 %v148
    %527 = vmatprep.subr.bf16.mxu0 %v151
    %528 = vmatpush1.bf16.msra.mxu0 %v150
    %529 = vmatprep.subr.bf16.mxu0 %v153
    %530 = vmatpush1.bf16.msra.mxu0 %v152
    %531 = vmatprep.subr.bf16.mxu0 %v155
    %532 = vmatpush1.bf16.msra.mxu0 %v154
    %533 = vmatprep.subr.bf16.mxu0 0
    %534 = vmatpush1.bf16.msra.mxu0 0
    %535 = vmatprep.subr.bf16.mxu0 0
    %536 = vmatpush1.bf16.msra.mxu0 0
    %537 = vmatprep.subr.bf16.mxu0 0
    %538 = vmatpush1.bf16.msra.mxu0 0
    %539 = vmatprep.subr.bf16.mxu0 0
    %540 = vmatpush1.bf16.msra.mxu0 0
    %541 = vmatprep.subr.bf16.mxu0 0
    %542 = vmatpush1.bf16.msra.mxu0 0
    %543 = vmatprep.subr.bf16.mxu0 0
    %544 = vmatpush1.bf16.msra.mxu0 0
    %545 = vmatprep.subr.bf16.mxu0 0
    %546 = vmatpush1.bf16.msra.mxu0 0
    %547 = vmatprep.subr.bf16.mxu0 0
    %548 = vmatpush1.bf16.msra.mxu0 0
    %549 = vmatprep.mubr.bf16.mxu0 0
    %550 = vmatmul.mubr.bf16.gmra.mrb[0].mxu0 %v516
    %v551 = vpop.f32.mrb[0].mxu0
    %v552 = vadd.f32 0.0, %v551
    %v553 = vpop.f32.mrb[0].mxu0
    %v554 = vadd.f32 0.0, %v553
    %v555 = vpop.f32.mrb[0].mxu0
    %v556 = vpop.f32.mrb[0].mxu0
    %557 = vdwg.mxu0
    %v558 = vadd.f32 %v514, %v552
    %v559 = vadd.f32 %v515, %v554
    %v560 = vtanh.pop %v558
    %v561 = vtanh.pop %v559
    %v562 = vmul.f32 %v560, 0.5
    %v563 = vadd.f32 %v562, 0.5
    %v564 = vmul.f32 %v561, 0.5
    %v565 = vadd.f32 %v564, 0.5
    %v566 = vsel %vm43, %v561, %v565
    %v567 = vmul.f32 %v563, %v566
    %568 = vrot.lane.b32.xlu0 %v567, 64
    %v569 = vpop.permute.xlu0 %568
    %v570 = vmul.f32 %v563, %v502
    %v571 = vadd.f32 %v569, %v570
    %v572 = vtanh.pop %v571
    %v573 = vmul.f32 %v566, %v572
    %s574 = scalar_lea.vmem %s0, 48
    %v575 = vld [vmem:[%s574] sm:$0xff]
    %577 = vset.pattern.permute.xlu0 0
    %578 = vperm.xlu0 %577, %v575
    %v579 = vpop.permute.xlu0 %578
    %v581 = vmul.f32 %v579, %v54
    %v582 = vmul.f32 %v579, %v58
    %v583 = vadd.f32 %v581, %v67
    %v584 = vadd.f32 %v582, %v71
    %v585 = vpack.c.bf16 %v573, %v573
    %586 = vmatprep.subr.bf16.mxu0 %v141
    %587 = vmatpush1.bf16.msra.mxu0 %v140
    %588 = vmatprep.subr.bf16.mxu0 %v143
    %589 = vmatpush1.bf16.msra.mxu0 %v142
    %590 = vmatprep.subr.bf16.mxu0 %v145
    %591 = vmatpush1.bf16.msra.mxu0 %v144
    %592 = vmatprep.subr.bf16.mxu0 %v147
    %593 = vmatpush1.bf16.msra.mxu0 %v146
    %594 = vmatprep.subr.bf16.mxu0 %v149
    %595 = vmatpush1.bf16.msra.mxu0 %v148
    %596 = vmatprep.subr.bf16.mxu0 %v151
    %597 = vmatpush1.bf16.msra.mxu0 %v150
    %598 = vmatprep.subr.bf16.mxu0 %v153
    %599 = vmatpush1.bf16.msra.mxu0 %v152
    %600 = vmatprep.subr.bf16.mxu0 %v155
    %601 = vmatpush1.bf16.msra.mxu0 %v154
    %602 = vmatprep.subr.bf16.mxu0 0
    %603 = vmatpush1.bf16.msra.mxu0 0
    %604 = vmatprep.subr.bf16.mxu0 0
    %605 = vmatpush1.bf16.msra.mxu0 0
    %606 = vmatprep.subr.bf16.mxu0 0
    %607 = vmatpush1.bf16.msra.mxu0 0
    %608 = vmatprep.subr.bf16.mxu0 0
    %609 = vmatpush1.bf16.msra.mxu0 0
    %610 = vmatprep.subr.bf16.mxu0 0
    %611 = vmatpush1.bf16.msra.mxu0 0
    %612 = vmatprep.subr.bf16.mxu0 0
    %613 = vmatpush1.bf16.msra.mxu0 0
    %614 = vmatprep.subr.bf16.mxu0 0
    %615 = vmatpush1.bf16.msra.mxu0 0
    %616 = vmatprep.subr.bf16.mxu0 0
    %617 = vmatpush1.bf16.msra.mxu0 0
    %618 = vmatprep.mubr.bf16.mxu0 0
    %619 = vmatmul.mubr.bf16.gmra.mrb[0].mxu0 %v585
    %v620 = vpop.f32.mrb[0].mxu0
    %v621 = vadd.f32 0.0, %v620
    %v622 = vpop.f32.mrb[0].mxu0
    %v623 = vadd.f32 0.0, %v622
    %v624 = vpop.f32.mrb[0].mxu0
    %v625 = vpop.f32.mrb[0].mxu0
    %626 = vdwg.mxu0
    %v627 = vadd.f32 %v583, %v621
    %v628 = vadd.f32 %v584, %v623
    %v629 = vtanh.pop %v627
    %v630 = vtanh.pop %v628
    %v631 = vmul.f32 %v629, 0.5
    %v632 = vadd.f32 %v631, 0.5
    %v633 = vmul.f32 %v630, 0.5
    %v634 = vadd.f32 %v633, 0.5
    %v635 = vsel %vm43, %v630, %v634
    %v636 = vmul.f32 %v632, %v635
    %637 = vrot.lane.b32.xlu0 %v636, 64
    %v638 = vpop.permute.xlu0 %637
    %v639 = vmul.f32 %v632, %v571
    %v640 = vadd.f32 %v638, %v639
    %v641 = vtanh.pop %v640
    %v642 = vmul.f32 %v635, %v641
    %s643 = scalar_lea.vmem %s0, 56
    %v644 = vld [vmem:[%s643] sm:$0xff]
    %646 = vset.pattern.permute.xlu0 0
    %647 = vperm.xlu0 %646, %v644
    %v648 = vpop.permute.xlu0 %647
    %v650 = vmul.f32 %v648, %v54
    %v651 = vmul.f32 %v648, %v58
    %v652 = vadd.f32 %v650, %v67
    %v653 = vadd.f32 %v651, %v71
    %v654 = vpack.c.bf16 %v642, %v642
    %655 = vmatprep.subr.bf16.mxu0 %v141
    %656 = vmatpush1.bf16.msra.mxu0 %v140
    %657 = vmatprep.subr.bf16.mxu0 %v143
    %658 = vmatpush1.bf16.msra.mxu0 %v142
    %659 = vmatprep.subr.bf16.mxu0 %v145
    %660 = vmatpush1.bf16.msra.mxu0 %v144
    %661 = vmatprep.subr.bf16.mxu0 %v147
    %662 = vmatpush1.bf16.msra.mxu0 %v146
    %663 = vmatprep.subr.bf16.mxu0 %v149
    %664 = vmatpush1.bf16.msra.mxu0 %v148
    %665 = vmatprep.subr.bf16.mxu0 %v151
    %666 = vmatpush1.bf16.msra.mxu0 %v150
    %667 = vmatprep.subr.bf16.mxu0 %v153
    %668 = vmatpush1.bf16.msra.mxu0 %v152
    %669 = vmatprep.subr.bf16.mxu0 %v155
    %670 = vmatpush1.bf16.msra.mxu0 %v154
    %671 = vmatprep.subr.bf16.mxu0 0
    %672 = vmatpush1.bf16.msra.mxu0 0
    %673 = vmatprep.subr.bf16.mxu0 0
    %674 = vmatpush1.bf16.msra.mxu0 0
    %675 = vmatprep.subr.bf16.mxu0 0
    %676 = vmatpush1.bf16.msra.mxu0 0
    %677 = vmatprep.subr.bf16.mxu0 0
    %678 = vmatpush1.bf16.msra.mxu0 0
    %679 = vmatprep.subr.bf16.mxu0 0
    %680 = vmatpush1.bf16.msra.mxu0 0
    %681 = vmatprep.subr.bf16.mxu0 0
    %682 = vmatpush1.bf16.msra.mxu0 0
    %683 = vmatprep.subr.bf16.mxu0 0
    %684 = vmatpush1.bf16.msra.mxu0 0
    %685 = vmatprep.subr.bf16.mxu0 0
    %686 = vmatpush1.bf16.msra.mxu0 0
    %687 = vmatprep.mubr.bf16.mxu0 0
    %688 = vmatmul.mubr.bf16.gmra.mrb[0].mxu0 %v654
    %v689 = vpop.f32.mrb[0].mxu0
    %v690 = vadd.f32 0.0, %v689
    %v691 = vpop.f32.mrb[0].mxu0
    %v692 = vadd.f32 0.0, %v691
    %v693 = vpop.f32.mrb[0].mxu0
    %v694 = vpop.f32.mrb[0].mxu0
    %695 = vdwg.mxu0
    %v696 = vadd.f32 %v652, %v690
    %v697 = vadd.f32 %v653, %v692
    %v698 = vtanh.pop %v696
    %v699 = vtanh.pop %v697
    %v700 = vmul.f32 %v698, 0.5
    %v701 = vadd.f32 %v700, 0.5
    %v702 = vmul.f32 %v699, 0.5
    %v703 = vadd.f32 %v702, 0.5
    %v704 = vsel %vm43, %v699, %v703
    %v705 = vmul.f32 %v701, %v704
    %706 = vrot.lane.b32.xlu0 %v705, 64
    %v707 = vpop.permute.xlu0 %706
    %v708 = vmul.f32 %v701, %v640
    %v709 = vadd.f32 %v707, %v708
    %v710 = vtanh.pop %v709
    %v711 = vmul.f32 %v704, %v710
    %s712 = scalar_lea.vmem %s0, 64
    %v713 = vld [vmem:[%s712] sm:$0xff]
    %715 = vset.pattern.permute.xlu0 0
    %716 = vperm.xlu0 %715, %v713
    %v717 = vpop.permute.xlu0 %716
    %v719 = vmul.f32 %v717, %v54
    %v720 = vmul.f32 %v717, %v58
    %v721 = vadd.f32 %v719, %v67
    %v722 = vadd.f32 %v720, %v71
    %v723 = vpack.c.bf16 %v711, %v711
    %724 = vmatprep.subr.bf16.mxu0 %v141
    %725 = vmatpush1.bf16.msra.mxu0 %v140
    %726 = vmatprep.subr.bf16.mxu0 %v143
    %727 = vmatpush1.bf16.msra.mxu0 %v142
    %728 = vmatprep.subr.bf16.mxu0 %v145
    %729 = vmatpush1.bf16.msra.mxu0 %v144
    %730 = vmatprep.subr.bf16.mxu0 %v147
    %731 = vmatpush1.bf16.msra.mxu0 %v146
    %732 = vmatprep.subr.bf16.mxu0 %v149
    %733 = vmatpush1.bf16.msra.mxu0 %v148
    %734 = vmatprep.subr.bf16.mxu0 %v151
    %735 = vmatpush1.bf16.msra.mxu0 %v150
    %736 = vmatprep.subr.bf16.mxu0 %v153
    %737 = vmatpush1.bf16.msra.mxu0 %v152
    %738 = vmatprep.subr.bf16.mxu0 %v155
    %739 = vmatpush1.bf16.msra.mxu0 %v154
    %740 = vmatprep.subr.bf16.mxu0 0
    %741 = vmatpush1.bf16.msra.mxu0 0
    %742 = vmatprep.subr.bf16.mxu0 0
    %743 = vmatpush1.bf16.msra.mxu0 0
    %744 = vmatprep.subr.bf16.mxu0 0
    %745 = vmatpush1.bf16.msra.mxu0 0
    %746 = vmatprep.subr.bf16.mxu0 0
    %747 = vmatpush1.bf16.msra.mxu0 0
    %748 = vmatprep.subr.bf16.mxu0 0
    %749 = vmatpush1.bf16.msra.mxu0 0
    %750 = vmatprep.subr.bf16.mxu0 0
    %751 = vmatpush1.bf16.msra.mxu0 0
    %752 = vmatprep.subr.bf16.mxu0 0
    %753 = vmatpush1.bf16.msra.mxu0 0
    %754 = vmatprep.subr.bf16.mxu0 0
    %755 = vmatpush1.bf16.msra.mxu0 0
    %756 = vmatprep.mubr.bf16.mxu0 0
    %757 = vmatmul.mubr.bf16.gmra.mrb[0].mxu0 %v723
    %v758 = vpop.f32.mrb[0].mxu0
    %v759 = vadd.f32 0.0, %v758
    %v760 = vpop.f32.mrb[0].mxu0
    %v761 = vadd.f32 0.0, %v760
    %v762 = vpop.f32.mrb[0].mxu0
    %v763 = vpop.f32.mrb[0].mxu0
    %764 = vdwg.mxu0
    %v765 = vadd.f32 %v721, %v759
    %v766 = vadd.f32 %v722, %v761
    %v767 = vtanh.pop %v765
    %v768 = vtanh.pop %v766
    %v769 = vmul.f32 %v767, 0.5
    %v770 = vadd.f32 %v769, 0.5
    %v771 = vmul.f32 %v768, 0.5
    %v772 = vadd.f32 %v771, 0.5
    %v773 = vsel %vm43, %v768, %v772
    %v774 = vmul.f32 %v770, %v773
    %775 = vrot.lane.b32.xlu0 %v774, 64
    %v776 = vpop.permute.xlu0 %775
    %v777 = vmul.f32 %v770, %v709
    %v778 = vadd.f32 %v776, %v777
    %v779 = vtanh.pop %v778
    %v780 = vmul.f32 %v773, %v779
    %s781 = scalar_lea.vmem %s0, 72
    %v782 = vld [vmem:[%s781] sm:$0xff]
    %784 = vset.pattern.permute.xlu0 0
    %785 = vperm.xlu0 %784, %v782
    %v786 = vpop.permute.xlu0 %785
    %v788 = vmul.f32 %v786, %v54
    %v789 = vmul.f32 %v786, %v58
    %v790 = vadd.f32 %v788, %v67
    %v791 = vadd.f32 %v789, %v71
    %v792 = vpack.c.bf16 %v780, %v780
    %793 = vmatprep.subr.bf16.mxu0 %v141
    %794 = vmatpush1.bf16.msra.mxu0 %v140
    %795 = vmatprep.subr.bf16.mxu0 %v143
    %796 = vmatpush1.bf16.msra.mxu0 %v142
    %797 = vmatprep.subr.bf16.mxu0 %v145
    %798 = vmatpush1.bf16.msra.mxu0 %v144
    %799 = vmatprep.subr.bf16.mxu0 %v147
    %800 = vmatpush1.bf16.msra.mxu0 %v146
    %801 = vmatprep.subr.bf16.mxu0 %v149
    %802 = vmatpush1.bf16.msra.mxu0 %v148
    %803 = vmatprep.subr.bf16.mxu0 %v151
    %804 = vmatpush1.bf16.msra.mxu0 %v150
    %805 = vmatprep.subr.bf16.mxu0 %v153
    %806 = vmatpush1.bf16.msra.mxu0 %v152
    %807 = vmatprep.subr.bf16.mxu0 %v155
    %808 = vmatpush1.bf16.msra.mxu0 %v154
    %809 = vmatprep.subr.bf16.mxu0 0
    %810 = vmatpush1.bf16.msra.mxu0 0
    %811 = vmatprep.subr.bf16.mxu0 0
    %812 = vmatpush1.bf16.msra.mxu0 0
    %813 = vmatprep.subr.bf16.mxu0 0
    %814 = vmatpush1.bf16.msra.mxu0 0
    %815 = vmatprep.subr.bf16.mxu0 0
    %816 = vmatpush1.bf16.msra.mxu0 0
    %817 = vmatprep.subr.bf16.mxu0 0
    %818 = vmatpush1.bf16.msra.mxu0 0
    %819 = vmatprep.subr.bf16.mxu0 0
    %820 = vmatpush1.bf16.msra.mxu0 0
    %821 = vmatprep.subr.bf16.mxu0 0
    %822 = vmatpush1.bf16.msra.mxu0 0
    %823 = vmatprep.subr.bf16.mxu0 0
    %824 = vmatpush1.bf16.msra.mxu0 0
    %825 = vmatprep.mubr.bf16.mxu0 0
    %826 = vmatmul.mubr.bf16.gmra.mrb[0].mxu0 %v792
    %v827 = vpop.f32.mrb[0].mxu0
    %v828 = vadd.f32 0.0, %v827
    %v829 = vpop.f32.mrb[0].mxu0
    %v830 = vadd.f32 0.0, %v829
    %v831 = vpop.f32.mrb[0].mxu0
    %v832 = vpop.f32.mrb[0].mxu0
    %833 = vdwg.mxu0
    %v834 = vadd.f32 %v790, %v828
    %v835 = vadd.f32 %v791, %v830
    %v836 = vtanh.pop %v834
    %v837 = vtanh.pop %v835
    %v838 = vmul.f32 %v836, 0.5
    %v839 = vadd.f32 %v838, 0.5
    %v840 = vmul.f32 %v837, 0.5
    %v841 = vadd.f32 %v840, 0.5
    %v842 = vsel %vm43, %v837, %v841
    %v843 = vmul.f32 %v839, %v842
    %844 = vrot.lane.b32.xlu0 %v843, 64
    %v845 = vpop.permute.xlu0 %844
    %v846 = vmul.f32 %v839, %v778
    %v847 = vadd.f32 %v845, %v846
    %v848 = vtanh.pop %v847
    %v849 = vmul.f32 %v842, %v848
    %s850 = scalar_lea.vmem %s0, 80
    %v851 = vld [vmem:[%s850] sm:$0xff]
    %853 = vset.pattern.permute.xlu0 0
    %854 = vperm.xlu0 %853, %v851
    %v855 = vpop.permute.xlu0 %854
    %v857 = vmul.f32 %v855, %v54
    %v858 = vmul.f32 %v855, %v58
    %v859 = vadd.f32 %v857, %v67
    %v860 = vadd.f32 %v858, %v71
    %v861 = vpack.c.bf16 %v849, %v849
    %862 = vmatprep.subr.bf16.mxu0 %v141
    %863 = vmatpush1.bf16.msra.mxu0 %v140
    %864 = vmatprep.subr.bf16.mxu0 %v143
    %865 = vmatpush1.bf16.msra.mxu0 %v142
    %866 = vmatprep.subr.bf16.mxu0 %v145
    %867 = vmatpush1.bf16.msra.mxu0 %v144
    %868 = vmatprep.subr.bf16.mxu0 %v147
    %869 = vmatpush1.bf16.msra.mxu0 %v146
    %870 = vmatprep.subr.bf16.mxu0 %v149
    %871 = vmatpush1.bf16.msra.mxu0 %v148
    %872 = vmatprep.subr.bf16.mxu0 %v151
    %873 = vmatpush1.bf16.msra.mxu0 %v150
    %874 = vmatprep.subr.bf16.mxu0 %v153
    %875 = vmatpush1.bf16.msra.mxu0 %v152
    %876 = vmatprep.subr.bf16.mxu0 %v155
    %877 = vmatpush1.bf16.msra.mxu0 %v154
    %878 = vmatprep.subr.bf16.mxu0 0
    %879 = vmatpush1.bf16.msra.mxu0 0
    %880 = vmatprep.subr.bf16.mxu0 0
    %881 = vmatpush1.bf16.msra.mxu0 0
    %882 = vmatprep.subr.bf16.mxu0 0
    %883 = vmatpush1.bf16.msra.mxu0 0
    %884 = vmatprep.subr.bf16.mxu0 0
    %885 = vmatpush1.bf16.msra.mxu0 0
    %886 = vmatprep.subr.bf16.mxu0 0
    %887 = vmatpush1.bf16.msra.mxu0 0
    %888 = vmatprep.subr.bf16.mxu0 0
    %889 = vmatpush1.bf16.msra.mxu0 0
    %890 = vmatprep.subr.bf16.mxu0 0
    %891 = vmatpush1.bf16.msra.mxu0 0
    %892 = vmatprep.subr.bf16.mxu0 0
    %893 = vmatpush1.bf16.msra.mxu0 0
    %894 = vmatprep.mubr.bf16.mxu0 0
    %895 = vmatmul.mubr.bf16.gmra.mrb[0].mxu0 %v861
    %v896 = vpop.f32.mrb[0].mxu0
    %v897 = vadd.f32 0.0, %v896
    %v898 = vpop.f32.mrb[0].mxu0
    %v899 = vadd.f32 0.0, %v898
    %v900 = vpop.f32.mrb[0].mxu0
    %v901 = vpop.f32.mrb[0].mxu0
    %902 = vdwg.mxu0
    %v903 = vadd.f32 %v859, %v897
    %v904 = vadd.f32 %v860, %v899
    %v905 = vtanh.pop %v903
    %v906 = vtanh.pop %v904
    %v907 = vmul.f32 %v905, 0.5
    %v908 = vadd.f32 %v907, 0.5
    %v909 = vmul.f32 %v906, 0.5
    %v910 = vadd.f32 %v909, 0.5
    %v911 = vsel %vm43, %v906, %v910
    %v912 = vmul.f32 %v908, %v911
    %913 = vrot.lane.b32.xlu0 %v912, 64
    %v914 = vpop.permute.xlu0 %913
    %v915 = vmul.f32 %v908, %v847
    %v916 = vadd.f32 %v914, %v915
    %v917 = vtanh.pop %v916
    %v918 = vmul.f32 %v911, %v917
    %s919 = scalar_lea.vmem %s0, 88
    %v920 = vld [vmem:[%s919] sm:$0xff]
    %922 = vset.pattern.permute.xlu0 0
    %923 = vperm.xlu0 %922, %v920
    %v924 = vpop.permute.xlu0 %923
    %v926 = vmul.f32 %v924, %v54
    %v927 = vmul.f32 %v924, %v58
    %v928 = vadd.f32 %v926, %v67
    %v929 = vadd.f32 %v927, %v71
    %v930 = vpack.c.bf16 %v918, %v918
    %931 = vmatprep.subr.bf16.mxu0 %v141
    %932 = vmatpush1.bf16.msra.mxu0 %v140
    %933 = vmatprep.subr.bf16.mxu0 %v143
    %934 = vmatpush1.bf16.msra.mxu0 %v142
    %935 = vmatprep.subr.bf16.mxu0 %v145
    %936 = vmatpush1.bf16.msra.mxu0 %v144
    %937 = vmatprep.subr.bf16.mxu0 %v147
    %938 = vmatpush1.bf16.msra.mxu0 %v146
    %939 = vmatprep.subr.bf16.mxu0 %v149
    %940 = vmatpush1.bf16.msra.mxu0 %v148
    %941 = vmatprep.subr.bf16.mxu0 %v151
    %942 = vmatpush1.bf16.msra.mxu0 %v150
    %943 = vmatprep.subr.bf16.mxu0 %v153
    %944 = vmatpush1.bf16.msra.mxu0 %v152
    %945 = vmatprep.subr.bf16.mxu0 %v155
    %946 = vmatpush1.bf16.msra.mxu0 %v154
    %947 = vmatprep.subr.bf16.mxu0 0
    %948 = vmatpush1.bf16.msra.mxu0 0
    %949 = vmatprep.subr.bf16.mxu0 0
    %950 = vmatpush1.bf16.msra.mxu0 0
    %951 = vmatprep.subr.bf16.mxu0 0
    %952 = vmatpush1.bf16.msra.mxu0 0
    %953 = vmatprep.subr.bf16.mxu0 0
    %954 = vmatpush1.bf16.msra.mxu0 0
    %955 = vmatprep.subr.bf16.mxu0 0
    %956 = vmatpush1.bf16.msra.mxu0 0
    %957 = vmatprep.subr.bf16.mxu0 0
    %958 = vmatpush1.bf16.msra.mxu0 0
    %959 = vmatprep.subr.bf16.mxu0 0
    %960 = vmatpush1.bf16.msra.mxu0 0
    %961 = vmatprep.subr.bf16.mxu0 0
    %962 = vmatpush1.bf16.msra.mxu0 0
    %963 = vmatprep.mubr.bf16.mxu0 0
    %964 = vmatmul.mubr.bf16.gmra.mrb[0].mxu0 %v930
    %v965 = vpop.f32.mrb[0].mxu0
    %v966 = vadd.f32 0.0, %v965
    %v967 = vpop.f32.mrb[0].mxu0
    %v968 = vadd.f32 0.0, %v967
    %v969 = vpop.f32.mrb[0].mxu0
    %v970 = vpop.f32.mrb[0].mxu0
    %971 = vdwg.mxu0
    %v972 = vadd.f32 %v928, %v966
    %v973 = vadd.f32 %v929, %v968
    %v974 = vtanh.pop %v972
    %v975 = vtanh.pop %v973
    %v976 = vmul.f32 %v974, 0.5
    %v977 = vadd.f32 %v976, 0.5
    %v978 = vmul.f32 %v975, 0.5
    %v979 = vadd.f32 %v978, 0.5
    %v980 = vsel %vm43, %v975, %v979
    %v981 = vmul.f32 %v977, %v980
    %982 = vrot.lane.b32.xlu0 %v981, 64
    %v983 = vpop.permute.xlu0 %982
    %v984 = vmul.f32 %v977, %v916
    %v985 = vadd.f32 %v983, %v984
    %v986 = vtanh.pop %v985
    %v987 = vmul.f32 %v980, %v986
    %s988 = scalar_lea.vmem %s0, 96
    %v989 = vld [vmem:[%s988] sm:$0xff]
    %991 = vset.pattern.permute.xlu0 0
    %992 = vperm.xlu0 %991, %v989
    %v993 = vpop.permute.xlu0 %992
    %v995 = vmul.f32 %v993, %v54
    %v996 = vmul.f32 %v993, %v58
    %v997 = vadd.f32 %v995, %v67
    %v998 = vadd.f32 %v996, %v71
    %v999 = vpack.c.bf16 %v987, %v987
    %1000 = vmatprep.subr.bf16.mxu0 %v141
    %1001 = vmatpush1.bf16.msra.mxu0 %v140
    %1002 = vmatprep.subr.bf16.mxu0 %v143
    %1003 = vmatpush1.bf16.msra.mxu0 %v142
    %1004 = vmatprep.subr.bf16.mxu0 %v145
    %1005 = vmatpush1.bf16.msra.mxu0 %v144
    %1006 = vmatprep.subr.bf16.mxu0 %v147
    %1007 = vmatpush1.bf16.msra.mxu0 %v146
    %1008 = vmatprep.subr.bf16.mxu0 %v149
    %1009 = vmatpush1.bf16.msra.mxu0 %v148
    %1010 = vmatprep.subr.bf16.mxu0 %v151
    %1011 = vmatpush1.bf16.msra.mxu0 %v150
    %1012 = vmatprep.subr.bf16.mxu0 %v153
    %1013 = vmatpush1.bf16.msra.mxu0 %v152
    %1014 = vmatprep.subr.bf16.mxu0 %v155
    %1015 = vmatpush1.bf16.msra.mxu0 %v154
    %1016 = vmatprep.subr.bf16.mxu0 0
    %1017 = vmatpush1.bf16.msra.mxu0 0
    %1018 = vmatprep.subr.bf16.mxu0 0
    %1019 = vmatpush1.bf16.msra.mxu0 0
    %1020 = vmatprep.subr.bf16.mxu0 0
    %1021 = vmatpush1.bf16.msra.mxu0 0
    %1022 = vmatprep.subr.bf16.mxu0 0
    %1023 = vmatpush1.bf16.msra.mxu0 0
    %1024 = vmatprep.subr.bf16.mxu0 0
    %1025 = vmatpush1.bf16.msra.mxu0 0
    %1026 = vmatprep.subr.bf16.mxu0 0
    %1027 = vmatpush1.bf16.msra.mxu0 0
    %1028 = vmatprep.subr.bf16.mxu0 0
    %1029 = vmatpush1.bf16.msra.mxu0 0
    %1030 = vmatprep.subr.bf16.mxu0 0
    %1031 = vmatpush1.bf16.msra.mxu0 0
    %1032 = vmatprep.mubr.bf16.mxu0 0
    %1033 = vmatmul.mubr.bf16.gmra.mrb[0].mxu0 %v999
    %v1034 = vpop.f32.mrb[0].mxu0
    %v1035 = vadd.f32 0.0, %v1034
    %v1036 = vpop.f32.mrb[0].mxu0
    %v1037 = vadd.f32 0.0, %v1036
    %v1038 = vpop.f32.mrb[0].mxu0
    %v1039 = vpop.f32.mrb[0].mxu0
    %1040 = vdwg.mxu0
    %v1041 = vadd.f32 %v997, %v1035
    %v1042 = vadd.f32 %v998, %v1037
    %v1043 = vtanh.pop %v1041
    %v1044 = vtanh.pop %v1042
    %v1045 = vmul.f32 %v1043, 0.5
    %v1046 = vadd.f32 %v1045, 0.5
    %v1047 = vmul.f32 %v1044, 0.5
    %v1048 = vadd.f32 %v1047, 0.5
    %v1049 = vsel %vm43, %v1044, %v1048
    %v1050 = vmul.f32 %v1046, %v1049
    %1051 = vrot.lane.b32.xlu0 %v1050, 64
    %v1052 = vpop.permute.xlu0 %1051
    %v1053 = vmul.f32 %v1046, %v985
    %v1054 = vadd.f32 %v1052, %v1053
    %v1055 = vtanh.pop %v1054
    %v1056 = vmul.f32 %v1049, %v1055
    %s1057 = scalar_lea.vmem %s0, 104
    %v1058 = vld [vmem:[%s1057] sm:$0xff]
    %1060 = vset.pattern.permute.xlu0 0
    %1061 = vperm.xlu0 %1060, %v1058
    %v1062 = vpop.permute.xlu0 %1061
    %v1064 = vmul.f32 %v1062, %v54
    %v1065 = vmul.f32 %v1062, %v58
    %v1066 = vadd.f32 %v1064, %v67
    %v1067 = vadd.f32 %v1065, %v71
    %v1068 = vpack.c.bf16 %v1056, %v1056
    %1069 = vmatprep.subr.bf16.mxu0 %v141
    %1070 = vmatpush1.bf16.msra.mxu0 %v140
    %1071 = vmatprep.subr.bf16.mxu0 %v143
    %1072 = vmatpush1.bf16.msra.mxu0 %v142
    %1073 = vmatprep.subr.bf16.mxu0 %v145
    %1074 = vmatpush1.bf16.msra.mxu0 %v144
    %1075 = vmatprep.subr.bf16.mxu0 %v147
    %1076 = vmatpush1.bf16.msra.mxu0 %v146
    %1077 = vmatprep.subr.bf16.mxu0 %v149
    %1078 = vmatpush1.bf16.msra.mxu0 %v148
    %1079 = vmatprep.subr.bf16.mxu0 %v151
    %1080 = vmatpush1.bf16.msra.mxu0 %v150
    %1081 = vmatprep.subr.bf16.mxu0 %v153
    %1082 = vmatpush1.bf16.msra.mxu0 %v152
    %1083 = vmatprep.subr.bf16.mxu0 %v155
    %1084 = vmatpush1.bf16.msra.mxu0 %v154
    %1085 = vmatprep.subr.bf16.mxu0 0
    %1086 = vmatpush1.bf16.msra.mxu0 0
    %1087 = vmatprep.subr.bf16.mxu0 0
    %1088 = vmatpush1.bf16.msra.mxu0 0
    %1089 = vmatprep.subr.bf16.mxu0 0
    %1090 = vmatpush1.bf16.msra.mxu0 0
    %1091 = vmatprep.subr.bf16.mxu0 0
    %1092 = vmatpush1.bf16.msra.mxu0 0
    %1093 = vmatprep.subr.bf16.mxu0 0
    %1094 = vmatpush1.bf16.msra.mxu0 0
    %1095 = vmatprep.subr.bf16.mxu0 0
    %1096 = vmatpush1.bf16.msra.mxu0 0
    %1097 = vmatprep.subr.bf16.mxu0 0
    %1098 = vmatpush1.bf16.msra.mxu0 0
    %1099 = vmatprep.subr.bf16.mxu0 0
    %1100 = vmatpush1.bf16.msra.mxu0 0
    %1101 = vmatprep.mubr.bf16.mxu0 0
    %1102 = vmatmul.mubr.bf16.gmra.mrb[0].mxu0 %v1068
    %v1103 = vpop.f32.mrb[0].mxu0
    %v1104 = vadd.f32 0.0, %v1103
    %v1105 = vpop.f32.mrb[0].mxu0
    %v1106 = vadd.f32 0.0, %v1105
    %v1107 = vpop.f32.mrb[0].mxu0
    %v1108 = vpop.f32.mrb[0].mxu0
    %1109 = vdwg.mxu0
    %v1110 = vadd.f32 %v1066, %v1104
    %v1111 = vadd.f32 %v1067, %v1106
    %v1112 = vtanh.pop %v1110
    %v1113 = vtanh.pop %v1111
    %v1114 = vmul.f32 %v1112, 0.5
    %v1115 = vadd.f32 %v1114, 0.5
    %v1116 = vmul.f32 %v1113, 0.5
    %v1117 = vadd.f32 %v1116, 0.5
    %v1118 = vsel %vm43, %v1113, %v1117
    %v1119 = vmul.f32 %v1115, %v1118
    %1120 = vrot.lane.b32.xlu0 %v1119, 64
    %v1121 = vpop.permute.xlu0 %1120
    %v1122 = vmul.f32 %v1115, %v1054
    %v1123 = vadd.f32 %v1121, %v1122
    %v1124 = vtanh.pop %v1123
    %v1125 = vmul.f32 %v1118, %v1124
    %s1126 = scalar_lea.vmem %s0, 112
    %v1127 = vld [vmem:[%s1126] sm:$0xff]
    %1129 = vset.pattern.permute.xlu0 0
    %1130 = vperm.xlu0 %1129, %v1127
    %v1131 = vpop.permute.xlu0 %1130
    %v1133 = vmul.f32 %v1131, %v54
    %v1134 = vmul.f32 %v1131, %v58
    %v1135 = vadd.f32 %v1133, %v67
    %v1136 = vadd.f32 %v1134, %v71
    %v1137 = vpack.c.bf16 %v1125, %v1125
    %1138 = vmatprep.subr.bf16.mxu0 %v141
    %1139 = vmatpush1.bf16.msra.mxu0 %v140
    %1140 = vmatprep.subr.bf16.mxu0 %v143
    %1141 = vmatpush1.bf16.msra.mxu0 %v142
    %1142 = vmatprep.subr.bf16.mxu0 %v145
    %1143 = vmatpush1.bf16.msra.mxu0 %v144
    %1144 = vmatprep.subr.bf16.mxu0 %v147
    %1145 = vmatpush1.bf16.msra.mxu0 %v146
    %1146 = vmatprep.subr.bf16.mxu0 %v149
    %1147 = vmatpush1.bf16.msra.mxu0 %v148
    %1148 = vmatprep.subr.bf16.mxu0 %v151
    %1149 = vmatpush1.bf16.msra.mxu0 %v150
    %1150 = vmatprep.subr.bf16.mxu0 %v153
    %1151 = vmatpush1.bf16.msra.mxu0 %v152
    %1152 = vmatprep.subr.bf16.mxu0 %v155
    %1153 = vmatpush1.bf16.msra.mxu0 %v154
    %1154 = vmatprep.subr.bf16.mxu0 0
    %1155 = vmatpush1.bf16.msra.mxu0 0
    %1156 = vmatprep.subr.bf16.mxu0 0
    %1157 = vmatpush1.bf16.msra.mxu0 0
    %1158 = vmatprep.subr.bf16.mxu0 0
    %1159 = vmatpush1.bf16.msra.mxu0 0
    %1160 = vmatprep.subr.bf16.mxu0 0
    %1161 = vmatpush1.bf16.msra.mxu0 0
    %1162 = vmatprep.subr.bf16.mxu0 0
    %1163 = vmatpush1.bf16.msra.mxu0 0
    %1164 = vmatprep.subr.bf16.mxu0 0
    %1165 = vmatpush1.bf16.msra.mxu0 0
    %1166 = vmatprep.subr.bf16.mxu0 0
    %1167 = vmatpush1.bf16.msra.mxu0 0
    %1168 = vmatprep.subr.bf16.mxu0 0
    %1169 = vmatpush1.bf16.msra.mxu0 0
    %1170 = vmatprep.mubr.bf16.mxu0 0
    %1171 = vmatmul.mubr.bf16.gmra.mrb[0].mxu0 %v1137
    %v1172 = vpop.f32.mrb[0].mxu0
    %v1173 = vadd.f32 0.0, %v1172
    %v1174 = vpop.f32.mrb[0].mxu0
    %v1175 = vadd.f32 0.0, %v1174
    %v1176 = vpop.f32.mrb[0].mxu0
    %v1177 = vpop.f32.mrb[0].mxu0
    %1178 = vdwg.mxu0
    %v1179 = vadd.f32 %v1135, %v1173
    %v1180 = vadd.f32 %v1136, %v1175
    %v1181 = vtanh.pop %v1179
    %v1182 = vtanh.pop %v1180
    %v1183 = vmul.f32 %v1181, 0.5
    %v1184 = vadd.f32 %v1183, 0.5
    %v1185 = vmul.f32 %v1182, 0.5
    %v1186 = vadd.f32 %v1185, 0.5
    %v1187 = vsel %vm43, %v1182, %v1186
    %v1188 = vmul.f32 %v1184, %v1187
    %1189 = vrot.lane.b32.xlu0 %v1188, 64
    %v1190 = vpop.permute.xlu0 %1189
    %v1191 = vmul.f32 %v1184, %v1123
    %v1192 = vadd.f32 %v1190, %v1191
    %v1193 = vtanh.pop %v1192
    %v1194 = vmul.f32 %v1187, %v1193
    %s1195 = scalar_lea.vmem %s0, 120
    %v1196 = vld [vmem:[%s1195] sm:$0xff]
    %1198 = vset.pattern.permute.xlu0 0
    %1199 = vperm.xlu0 %1198, %v1196
    %v1200 = vpop.permute.xlu0 %1199
    %v1202 = vmul.f32 %v1200, %v54
    %v1203 = vmul.f32 %v1200, %v58
    %v1204 = vadd.f32 %v1202, %v67
    %v1205 = vadd.f32 %v1203, %v71
    %v1206 = vpack.c.bf16 %v1194, %v1194
    %1207 = vmatprep.subr.bf16.mxu0 %v141
    %1208 = vmatpush1.bf16.msra.mxu0 %v140
    %1209 = vmatprep.subr.bf16.mxu0 %v143
    %1210 = vmatpush1.bf16.msra.mxu0 %v142
    %1211 = vmatprep.subr.bf16.mxu0 %v145
    %1212 = vmatpush1.bf16.msra.mxu0 %v144
    %1213 = vmatprep.subr.bf16.mxu0 %v147
    %1214 = vmatpush1.bf16.msra.mxu0 %v146
    %1215 = vmatprep.subr.bf16.mxu0 %v149
    %1216 = vmatpush1.bf16.msra.mxu0 %v148
    %1217 = vmatprep.subr.bf16.mxu0 %v151
    %1218 = vmatpush1.bf16.msra.mxu0 %v150
    %1219 = vmatprep.subr.bf16.mxu0 %v153
    %1220 = vmatpush1.bf16.msra.mxu0 %v152
    %1221 = vmatprep.subr.bf16.mxu0 %v155
    %1222 = vmatpush1.bf16.msra.mxu0 %v154
    %1223 = vmatprep.subr.bf16.mxu0 0
    %1224 = vmatpush1.bf16.msra.mxu0 0
    %1225 = vmatprep.subr.bf16.mxu0 0
    %1226 = vmatpush1.bf16.msra.mxu0 0
    %1227 = vmatprep.subr.bf16.mxu0 0
    %1228 = vmatpush1.bf16.msra.mxu0 0
    %1229 = vmatprep.subr.bf16.mxu0 0
    %1230 = vmatpush1.bf16.msra.mxu0 0
    %1231 = vmatprep.subr.bf16.mxu0 0
    %1232 = vmatpush1.bf16.msra.mxu0 0
    %1233 = vmatprep.subr.bf16.mxu0 0
    %1234 = vmatpush1.bf16.msra.mxu0 0
    %1235 = vmatprep.subr.bf16.mxu0 0
    %1236 = vmatpush1.bf16.msra.mxu0 0
    %1237 = vmatprep.subr.bf16.mxu0 0
    %1238 = vmatpush1.bf16.msra.mxu0 0
    %1239 = vmatprep.mubr.bf16.mxu0 0
    %1240 = vmatmul.mubr.bf16.gmra.mrb[0].mxu0 %v1206
    %v1241 = vpop.f32.mrb[0].mxu0
    %v1242 = vadd.f32 0.0, %v1241
    %v1243 = vpop.f32.mrb[0].mxu0
    %v1244 = vadd.f32 0.0, %v1243
    %v1245 = vpop.f32.mrb[0].mxu0
    %v1246 = vpop.f32.mrb[0].mxu0
    %1247 = vdwg.mxu0
    %v1248 = vadd.f32 %v1204, %v1242
    %v1249 = vadd.f32 %v1205, %v1244
    %v1250 = vtanh.pop %v1248
    %v1251 = vtanh.pop %v1249
    %v1252 = vmul.f32 %v1250, 0.5
    %v1253 = vadd.f32 %v1252, 0.5
    %v1254 = vmul.f32 %v1251, 0.5
    %v1255 = vadd.f32 %v1254, 0.5
    %v1256 = vsel %vm43, %v1251, %v1255
    %v1257 = vmul.f32 %v1253, %v1256
    %1258 = vrot.lane.b32.xlu0 %v1257, 64
    %v1259 = vpop.permute.xlu0 %1258
    %v1260 = vmul.f32 %v1253, %v1192
    %v1261 = vadd.f32 %v1259, %v1260
    %v1262 = vld [vmem:[#allocation2] sm:$0xff]
    %v1263 = vld [vmem:[#allocation2 + $0x8] sm:$0xff]
    %v1264 = vld [vmem:[#allocation2 + $0x10] sm:$0xff]
    %v1265 = vld [vmem:[#allocation2 + $0x18] sm:$0xff]
    %v1266 = vld [vmem:[#allocation2 + $0x20] sm:$0xff]
    %v1267 = vld [vmem:[#allocation2 + $0x28] sm:$0xff]
    %v1268 = vld [vmem:[#allocation2 + $0x30] sm:$0xff]
    %v1269 = vld [vmem:[#allocation2 + $0x38] sm:$0xff]
    %v1270 = vld [vmem:[#allocation2 + $0x40] sm:$0xff]
    %v1271 = vld [vmem:[#allocation2 + $0x48] sm:$0xff]
    %v1272 = vld [vmem:[#allocation2 + $0x50] sm:$0xff]
    %v1273 = vld [vmem:[#allocation2 + $0x58] sm:$0xff]
    %v1274 = vld [vmem:[#allocation2 + $0x60] sm:$0xff]
    %v1275 = vld [vmem:[#allocation2 + $0x68] sm:$0xff]
    %v1276 = vld [vmem:[#allocation2 + $0x70] sm:$0xff]
    %v1277 = vld [vmem:[#allocation2 + $0x78] sm:$0xff]
    %v1278 = vld [vmem:[%s5] sm:$0x1]
    %v1280 = vlaneseq
    %v1281 = vshrl.u32 %v1280, 7
    %v1282 = vsub.s32 0, %v1281
    %v1283 = vrot.slane %v1278, %v1282
    %1285 = vmatprep.subr.mxu0 0.0
    %1286 = vmatpush1.msra.mxu0 %v1262
    %1287 = vmatprep.subr.mxu0 0.0
    %1288 = vmatpush1.msra.mxu0 %v1263
    %1289 = vmatprep.subr.mxu0 0.0
    %1290 = vmatpush1.msra.mxu0 %v1264
    %1291 = vmatprep.subr.mxu0 0.0
    %1292 = vmatpush1.msra.mxu0 %v1265
    %1293 = vmatprep.subr.mxu0 0.0
    %1294 = vmatpush1.msra.mxu0 %v1266
    %1295 = vmatprep.subr.mxu0 0.0
    %1296 = vmatpush1.msra.mxu0 %v1267
    %1297 = vmatprep.subr.mxu0 0.0
    %1298 = vmatpush1.msra.mxu0 %v1268
    %1299 = vmatprep.subr.mxu0 0.0
    %1300 = vmatpush1.msra.mxu0 %v1269
    %1301 = vmatprep.subr.mxu0 0.0
    %1302 = vmatpush1.msra.mxu0 %v1270
    %1303 = vmatprep.subr.mxu0 0.0
    %1304 = vmatpush1.msra.mxu0 %v1271
    %1305 = vmatprep.subr.mxu0 0.0
    %1306 = vmatpush1.msra.mxu0 %v1272
    %1307 = vmatprep.subr.mxu0 0.0
    %1308 = vmatpush1.msra.mxu0 %v1273
    %1309 = vmatprep.subr.mxu0 0.0
    %1310 = vmatpush1.msra.mxu0 %v1274
    %1311 = vmatprep.subr.mxu0 0.0
    %1312 = vmatpush1.msra.mxu0 %v1275
    %1313 = vmatprep.subr.mxu0 0.0
    %1314 = vmatpush1.msra.mxu0 %v1276
    %1315 = vmatprep.subr.mxu0 0.0
    %1316 = vmatpush1.msra.mxu0 %v1277
    %1317 = vmatprep.subr.mxu0 0.0
    %1318 = vmatpush1.msra.mxu0 0.0
    %1319 = vmatprep.subr.mxu0 0.0
    %1320 = vmatpush1.msra.mxu0 0.0
    %1321 = vmatprep.subr.mxu0 0.0
    %1322 = vmatpush1.msra.mxu0 0.0
    %1323 = vmatprep.subr.mxu0 0.0
    %1324 = vmatpush1.msra.mxu0 0.0
    %1325 = vmatprep.subr.mxu0 0.0
    %1326 = vmatpush1.msra.mxu0 0.0
    %1327 = vmatprep.subr.mxu0 0.0
    %1328 = vmatpush1.msra.mxu0 0.0
    %1329 = vmatprep.subr.mxu0 0.0
    %1330 = vmatpush1.msra.mxu0 0.0
    %1331 = vmatprep.subr.mxu0 0.0
    %1332 = vmatpush1.msra.mxu0 0.0
    %1333 = vmatprep.subr.mxu0 0.0
    %1334 = vmatpush1.msra.mxu0 0.0
    %1335 = vmatprep.subr.mxu0 0.0
    %1336 = vmatpush1.msra.mxu0 0.0
    %1337 = vmatprep.subr.mxu0 0.0
    %1338 = vmatpush1.msra.mxu0 0.0
    %1339 = vmatprep.subr.mxu0 0.0
    %1340 = vmatpush1.msra.mxu0 0.0
    %1341 = vmatprep.subr.mxu0 0.0
    %1342 = vmatpush1.msra.mxu0 0.0
    %1343 = vmatprep.subr.mxu0 0.0
    %1344 = vmatpush1.msra.mxu0 0.0
    %1345 = vmatprep.subr.mxu0 0.0
    %1346 = vmatpush1.msra.mxu0 0.0
    %1347 = vmatprep.subr.mxu0 0.0
    %1348 = vmatpush1.msra.mxu0 0.0
    %1349 = vmatprep.mubr.f32.mxu0 0.0
    %1350 = vmatmul.mubr.f32.gmra.mrb[0].mxu0 %v1261
    %v1351 = vpop.f32.mrb[0].mxu0
    %v1352 = vadd.f32 %v1283, %v1351
    %v1353 = vpop.f32.mrb[0].mxu0
    %1354 = vdwg.mxu0
    %1355 = vst [vmem:[#allocation5] sm:$0xff] %v1352
    // Predicated region
    $region30: #{tpu_custom_call.1} parent=1 // pred_check
      _
    $region31: #{tpu_custom_call.1} parent=1 // pred_check_branch
      %1357 = sbr.rel (0) target = $region33
    $region32: #{tpu_custom_call.1} parent=1 // pred_region
      %s1359 = ssub.s32 128, 128
      %1360 = vsyncadd [#allocation4], %s1359
      %s1362 = sshll.u32 [#allocation5], 4
      %s1363 = int_to_ptr.vmem [resolvable:$true] %s1362
      %1365 = dma.vmem_to_hbm [thread:$0]  %s1363, 128, %s6, [#allocation4]
    $region33: #{tpu_custom_call.1} parent=1 // pred_fallthru
      _
    // Predicated region
    $region34: #{tpu_custom_call.1} parent=1 // pred_check
      _
    $region35: #{tpu_custom_call.1} parent=1 // pred_check_branch
      %1367 = sbr.rel (0) target = $region37
    $region36: #{tpu_custom_call.1} parent=1 // pred_region
      %1368 = dma.done [#allocation4], 128
    $region37: #{tpu_custom_call.1} parent=1 // pred_fallthru
      _
    %1369 = vsyncpa [#allocation3], 1
    %1370 = vsyncpa [#allocation4], 1

</llo_original>
